<compile_context>
chip_gen: v7x
topology: tpu7x:2x2x1
jax: 0.10.0
libtpu: 0.0.40
codegen_flags: <defaults>
</compile_context>

<pallas_src>
import functools

import jax
import jax.numpy as jnp
from jax.experimental import pallas as pl
from jax.experimental.pallas import tpu as pltpu


# ----------------------------------------------------------------------------
# Pallas kernel: fused DoubleConv = (3x3 conv -> BN(eval) -> ReLU) x 2.
# ----------------------------------------------------------------------------
def _double_conv_kernel(x_ref, w1_ref, s1_ref, b1_ref, w2_ref, s2_ref, b2_ref,
                        mask_ref, o_ref, mid_ref, *, H, W):
    # Layout: channels on sublanes, flattened (padded) spatial on lanes.
    #   x_ref:   (Bblk, Cin, Lp)  bf16  Lp = (H+2)*(W+2) + 2 (zero-padded frame)
    #   w*_ref:  (9, Co, Ci)      bf16  tap t = kh*3 + kw
    #   s*/b*:   (Co, 1)          f32   folded BN scale / shift
    #   mask:    (1, M)           f32   zeroes the 2 junk columns per row
    #   o_ref:   (Bblk, Cout, M)  f32   "wide" output (junk cols stripped in XLA)
    #   mid_ref: (Cmid, Lp)       bf16  VMEM scratch: conv1's padded output frame
    Wp = W + 2
    M = H * Wp
    mask = mask_ref[...]

    def conv9(w_ref, src, scale, shift):
        # 9 row/col-shifted matmuls == 3x3 conv; static, aligned-free lane slices.
        acc = None
        for kh in range(3):
            for kw in range(3):
                t = kh * 3 + kw
                s = kh * Wp + kw
                p = jnp.dot(w_ref[t], src[:, s:s + M],
                            preferred_element_type=jnp.float32)
                acc = p if acc is None else acc + p
        return jnp.maximum(acc * scale + shift, 0.0)

    for b in range(x_ref.shape[0]):                     # static Bblk loop
        x = x_ref[b]                                    # (Cin, Lp) bf16
        # conv1 + BN + ReLU -> zero-bordered padded frame, kept in VMEM.
        # The masked junk columns land exactly on the frame's padding columns,
        # so masking them to 0 makes mid a valid zero-padded input for conv2.
        y1 = conv9(w1_ref, x, s1_ref[...], b1_ref[...]) * mask
        mid_ref[...] = jnp.zeros_like(mid_ref)
        mid_ref[:, Wp + 1:Wp + 1 + M] = y1.astype(mid_ref.dtype)
        # conv2 + BN + ReLU -> lane-dense wide output block.
        y2 = conv9(w2_ref, mid_ref[...], s2_ref[...], b2_ref[...])
        o_ref[b] = y2.astype(o_ref.dtype)


def double_conv_pallas(x, p, eps=1e-5):
    """x: (B, Cin, H, W) NCHW f32.  Fused (conv3x3 + BN(eval) + ReLU) * 2."""
    B, Cin, H, W = x.shape
    Cmid = p["w1"].shape[0]
    Cout = p["w2"].shape[0]
    Hp, Wp = H + 2, W + 2
    M = H * Wp                       # wide width (2 junk columns per row)
    Lp = Hp * Wp + 2                 # flattened padded frame + 2-lane tail

    # Zero-pad H/W by 1 (PyTorch padding=1), flatten spatial, add a 2-lane tail
    # so the largest tap shift stays in bounds; stage activations as bf16.
    xp = jnp.pad(x, ((0, 0), (0, 0), (1, 1), (1, 1))).reshape(B, Cin, Hp * Wp)
    xp = jnp.pad(xp, ((0, 0), (0, 0), (0, 2))).astype(jnp.bfloat16)

    # (Co, Ci, 3, 3) -> (9 taps, Co, Ci), tap t = kh*3 + kw.
    w1 = jnp.transpose(p["w1"], (2, 3, 0, 1)).reshape(9, Cmid, Cin)
    w2 = jnp.transpose(p["w2"], (2, 3, 0, 1)).reshape(9, Cout, Cmid)
    w1 = w1.astype(jnp.bfloat16)
    w2 = w2.astype(jnp.bfloat16)

    # Fold conv bias + eval-mode BatchNorm into per-channel scale/shift (f32).
    def fold(b, g, be, m, v):
        s = g / jnp.sqrt(v + eps)
        return (s.astype(jnp.float32).reshape(-1, 1),
                ((b - m) * s + be).astype(jnp.float32).reshape(-1, 1))
    s1, sh1 = fold(p["b1"], p["g1"], p["be1"], p["m1"], p["v1"])
    s2, sh2 = fold(p["b2"], p["g2"], p["be2"], p["m2"], p["v2"])

    # Mask zeroing the 2 junk columns each row leaves in the wide layout.
    mask = ((jnp.arange(M) % Wp) < W).astype(jnp.float32).reshape(1, M)

    # Even "parallel" grid: both v7x TensorCores get work; v5e/v6e (single TC)
    # see at most 2 large, well-amortized sequential steps.
    G = 2 if (B % 2 == 0) else B
    Bblk = B // G
    # TODO(synk): at real UNet resolutions add an H-tile grid axis (2-row halo)
    # and set vmem_limit_bytes; at these shapes each image fits trivially in VMEM.

    out = pl.pallas_call(
        functools.partial(_double_conv_kernel, H=H, W=W),
        out_shape=jax.ShapeDtypeStruct((B, Cout, M), jnp.float32),
        grid_spec=pltpu.PrefetchScalarGridSpec(
            num_scalar_prefetch=0,
            grid=(G,),
            in_specs=[
                pl.BlockSpec((Bblk, Cin, Lp), lambda g: (g, 0, 0)),
                pl.BlockSpec((9, Cmid, Cin), lambda g: (0, 0, 0)),
                pl.BlockSpec((Cmid, 1), lambda g: (0, 0)),
                pl.BlockSpec((Cmid, 1), lambda g: (0, 0)),
                pl.BlockSpec((9, Cout, Cmid), lambda g: (0, 0, 0)),
                pl.BlockSpec((Cout, 1), lambda g: (0, 0)),
                pl.BlockSpec((Cout, 1), lambda g: (0, 0)),
                pl.BlockSpec((1, M), lambda g: (0, 0)),
            ],
            out_specs=pl.BlockSpec((Bblk, Cout, M), lambda g: (g, 0, 0)),
            scratch_shapes=[pltpu.VMEM((Cmid, Lp), jnp.bfloat16)],
        ),
        compiler_params=pltpu.CompilerParams(
            dimension_semantics=("parallel",)),
    )(xp, w1, s1, sh1, w2, s2, sh2, mask)

    # Strip the junk columns: (B, Cout, H*(W+2)) -> (B, Cout, H, W).
    return out.reshape(B, Cout, H, Wp)[:, :, :, :W]


# ----------------------------------------------------------------------------
# Up.forward wrapper (upsample + pad + concat in XLA, DoubleConv in Pallas).
# ----------------------------------------------------------------------------
def _upsample2x_bilinear(x):
    """NCHW bilinear 2x upsample, align_corners=True (gather + lerp, exact f32)."""
    B, C, H, W = x.shape

    def idx(n):
        if n == 1:
            z = jnp.zeros((2,), jnp.int32)
            return z, z, jnp.zeros((2,), jnp.float32)
        src = jnp.arange(2 * n, dtype=jnp.float32) * ((n - 1) / (2 * n - 1))
        lo = jnp.clip(jnp.floor(src), 0, n - 2).astype(jnp.int32)
        return lo, lo + 1, src - lo.astype(jnp.float32)

    lo_h, hi_h, fh = idx(H)
    lo_w, hi_w, fw = idx(W)
    xh = (x[:, :, lo_h, :] * (1.0 - fh)[None, None, :, None]
          + x[:, :, hi_h, :] * fh[None, None, :, None])
    return xh[:, :, :, lo_w] * (1.0 - fw) + xh[:, :, :, hi_w] * fw


def up_forward(x1, x2, params):
    """Pallas-backed forward of Up(bilinear=True).  x1, x2: NCHW."""
    # TODO(synk): BatchNorm uses eval-mode running stats (folded scale/shift);
    # training-mode batch statistics are not computed. Upsample / pad / concat
    # stay in XLA (pure data reorg), channels-first end-to-end.
    x1u = _upsample2x_bilinear(x1)
    dY = x2.shape[2] - x1u.shape[2]
    dX = x2.shape[3] - x1u.shape[3]
    x1u = jnp.pad(x1u, ((0, 0), (0, 0),
                        (dY // 2, dY - dY // 2), (dX // 2, dX - dX // 2)))
    x = jnp.concatenate([x2, x1u], axis=1)          # torch.cat([x2, x1], dim=1)
    return double_conv_pallas(x, params)


# ----------------------------------------------------------------------------
# Pure-JAX reference (interp-matrix upsample + lax conv, f32 HIGHEST).
# ----------------------------------------------------------------------------
def _interp_matrix_2x(n_in):
    n_out = 2 * n_in
    if n_in == 1:
        return jnp.ones((n_out, 1), jnp.float32)
    src = jnp.arange(n_out, dtype=jnp.float32) * ((n_in - 1) / (n_out - 1))
    lo = jnp.clip(jnp.floor(src), 0, n_in - 2).astype(jnp.int32)
    frac = src - lo.astype(jnp.float32)
    rows = jnp.arange(n_out)
    A = jnp.zeros((n_out, n_in), jnp.float32)
    A = A.at[rows, lo].add(1.0 - frac)
    A = A.at[rows, lo + 1].add(frac)
    return A


def _ref_upsample2x(x):
    _, _, H, W = x.shape
    A_h = _interp_matrix_2x(H)
    A_w = _interp_matrix_2x(W)
    return jnp.einsum("Hh,bchw,Ww->bcHW", A_h, x, A_w,
                      precision=jax.lax.Precision.HIGHEST)


def _ref_conv_bn_relu(x, w, b, g, be, m, v, eps=1e-5):
    y = jax.lax.conv_general_dilated(
        x, w, window_strides=(1, 1), padding=((1, 1), (1, 1)),
        dimension_numbers=("NCHW", "OIHW", "NCHW"),
        precision=jax.lax.Precision.HIGHEST)
    y = y + b[None, :, None, None]
    y = ((y - m[None, :, None, None])
         / jnp.sqrt(v[None, :, None, None] + eps)
         * g[None, :, None, None] + be[None, :, None, None])
    return jnp.maximum(y, 0.0)


def up_reference(x1, x2, p):
    x1u = _ref_upsample2x(x1)
    dY = x2.shape[2] - x1u.shape[2]
    dX = x2.shape[3] - x1u.shape[3]
    x1u = jnp.pad(x1u, ((0, 0), (0, 0),
                        (dY // 2, dY - dY // 2), (dX // 2, dX - dX // 2)))
    x = jnp.concatenate([x2, x1u], axis=1)
    y = _ref_conv_bn_relu(x, p["w1"], p["b1"], p["g1"], p["be1"], p["m1"], p["v1"])
    y = _ref_conv_bn_relu(y, p["w2"], p["b2"], p["g2"], p["be2"], p["m2"], p["v2"])
    return y


def init_params(key, in_channels, out_channels):
    mid = in_channels // 2
    ks = jax.random.split(key, 12)
    return dict(
        w1=0.1 * jax.random.normal(ks[0], (mid, in_channels, 3, 3), jnp.float32),
        b1=0.1 * jax.random.normal(ks[1], (mid,), jnp.float32),
        g1=1.0 + 0.1 * jax.random.normal(ks[2], (mid,), jnp.float32),
        be1=0.1 * jax.random.normal(ks[3], (mid,), jnp.float32),
        m1=0.1 * jax.random.normal(ks[4], (mid,), jnp.float32),
        v1=0.8 + 0.4 * jax.random.uniform(ks[5], (mid,), jnp.float32),
        w2=0.1 * jax.random.normal(ks[6], (out_channels, mid, 3, 3), jnp.float32),
        b2=0.1 * jax.random.normal(ks[7], (out_channels,), jnp.float32),
        g2=1.0 + 0.1 * jax.random.normal(ks[8], (out_channels,), jnp.float32),
        be2=0.1 * jax.random.normal(ks[9], (out_channels,), jnp.float32),
        m2=0.1 * jax.random.normal(ks[10], (out_channels,), jnp.float32),
        v2=0.8 + 0.4 * jax.random.uniform(ks[11], (out_channels,), jnp.float32),
    )


if __name__ == "__main__":
    # Up(in_channels=8, out_channels=8, bilinear=True); x1 is the deeper
    # decoder feature (half channels, smaller spatial), x2 the skip connection.
    in_channels = 8
    out_channels = 8
    B = 2

    key = jax.random.PRNGKey(0)
    k1, k2, kp = jax.random.split(key, 3)
    x1 = jax.random.normal(k1, (B, in_channels // 2, 7, 7), jnp.float32)
    x2 = jax.random.normal(k2, (B, in_channels // 2, 16, 16), jnp.float32)
    params = init_params(kp, in_channels, out_channels)

    fwd = jax.jit(up_forward)
    out = fwd(x1, x2, params)
    jax.block_until_ready(out)

    ref = up_reference(x1, x2, params)
    assert out.shape == (B, out_channels, 16, 16), out.shape
    err = float(jnp.max(jnp.abs(out - ref)))
    ref_mag = float(jnp.max(jnp.abs(ref))) + 1e-6
    # Kernel stages activations/weights in bf16 (f32 MXU accumulation);
    # reference is f32 HIGHEST.
    assert err / ref_mag < 5e-2, (err, ref_mag)

    print("KERNEL_OK")
</pallas_src>

<mosaic_0001>
module attributes {stable_mosaic.version = 11 : i64} {
  func.func @_double_conv_kernel(%arg0: i32, %arg1: memref<1x8x326xbf16, #tpu.memory_space<vmem>>, %arg2: memref<9x4x8xbf16, #tpu.memory_space<vmem>>, %arg3: memref<4x1xf32, #tpu.memory_space<vmem>>, %arg4: memref<4x1xf32, #tpu.memory_space<vmem>>, %arg5: memref<9x8x4xbf16, #tpu.memory_space<vmem>>, %arg6: memref<8x1xf32, #tpu.memory_space<vmem>>, %arg7: memref<8x1xf32, #tpu.memory_space<vmem>>, %arg8: memref<1x288xf32, #tpu.memory_space<vmem>>, %arg9: memref<1x8x288xf32, #tpu.memory_space<vmem>>, %arg10: memref<4x326xbf16, #tpu.memory_space<vmem>>) attributes {dimension_semantics = [#tpu.dimension_semantics<parallel>], iteration_bounds = array<i64: 2>, scalar_prefetch = 0 : i64, scratch_operands = 1 : i64, tpu.core_type = #tpu.core_type<tc>, window_params = [{transform_indices = @transform_0, window_bounds = array<i64: 1, 8, 326>}, {pipeline_mode = #tpu.pipeline_mode<synchronous>, transform_indices = @transform_1, window_bounds = array<i64: 9, 4, 8>}, {pipeline_mode = #tpu.pipeline_mode<synchronous>, transform_indices = @transform_2, window_bounds = array<i64: 4, 1>}, {pipeline_mode = #tpu.pipeline_mode<synchronous>, transform_indices = @transform_3, window_bounds = array<i64: 4, 1>}, {pipeline_mode = #tpu.pipeline_mode<synchronous>, transform_indices = @transform_4, window_bounds = array<i64: 9, 8, 4>}, {pipeline_mode = #tpu.pipeline_mode<synchronous>, transform_indices = @transform_5, window_bounds = array<i64: 8, 1>}, {pipeline_mode = #tpu.pipeline_mode<synchronous>, transform_indices = @transform_6, window_bounds = array<i64: 8, 1>}, {pipeline_mode = #tpu.pipeline_mode<synchronous>, transform_indices = @transform_7, window_bounds = array<i64: 1, 288>}, {transform_indices = @transform_8, window_bounds = array<i64: 1, 8, 288>}]} {
    %c0 = arith.constant 0 : index
    %c0_0 = arith.constant 0 : index
    %0 = vector.load %arg8[%c0, %c0_0] : memref<1x288xf32, #tpu.memory_space<vmem>>, vector<1x288xf32>
    %c0_1 = arith.constant 0 : index
    %c0_2 = arith.constant 0 : index
    %c0_3 = arith.constant 0 : index
    %1 = vector.load %arg1[%c0_1, %c0_2, %c0_3] : memref<1x8x326xbf16, #tpu.memory_space<vmem>>, vector<1x8x326xbf16>
    %2 = vector.shape_cast %1 : vector<1x8x326xbf16> to vector<8x326xbf16>
    %c0_4 = arith.constant 0 : index
    %c0_5 = arith.constant 0 : index
    %3 = vector.load %arg3[%c0_4, %c0_5] : memref<4x1xf32, #tpu.memory_space<vmem>>, vector<4x1xf32>
    %c0_6 = arith.constant 0 : index
    %c0_7 = arith.constant 0 : index
    %4 = vector.load %arg4[%c0_6, %c0_7] : memref<4x1xf32, #tpu.memory_space<vmem>>, vector<4x1xf32>
    %c0_8 = arith.constant 0 : index
    %c0_9 = arith.constant 0 : index
    %c0_10 = arith.constant 0 : index
    %5 = vector.load %arg2[%c0_8, %c0_9, %c0_10] : memref<9x4x8xbf16, #tpu.memory_space<vmem>>, vector<1x4x8xbf16>
    %6 = vector.shape_cast %5 : vector<1x4x8xbf16> to vector<4x8xbf16>
    %7 = vector.extract_strided_slice %2 {offsets = [0, 0], sizes = [8, 288], strides = [1, 1]} : vector<8x326xbf16> to vector<8x288xbf16>
    %cst = arith.constant dense<0.000000e+00> : vector<4x288xf32>
    %8 = tpu.matmul %6, %7, %cst {dimension_numbers = #tpu.dot_dimension_numbers<[1], [0], [0], [1], [0, 0, 1, 1], [], []>} : vector<4x8xbf16>, vector<8x288xbf16>, vector<4x288xf32> -> vector<4x288xf32>
    %c1 = arith.constant 1 : index
    %c0_11 = arith.constant 0 : index
    %c0_12 = arith.constant 0 : index
    %9 = vector.load %arg2[%c1, %c0_11, %c0_12] : memref<9x4x8xbf16, #tpu.memory_space<vmem>>, vector<1x4x8xbf16>
    %10 = vector.shape_cast %9 : vector<1x4x8xbf16> to vector<4x8xbf16>
    %11 = vector.extract_strided_slice %2 {offsets = [0, 1], sizes = [8, 288], strides = [1, 1]} : vector<8x326xbf16> to vector<8x288xbf16>
    %cst_13 = arith.constant dense<0.000000e+00> : vector<4x288xf32>
    %12 = tpu.matmul %10, %11, %cst_13 {dimension_numbers = #tpu.dot_dimension_numbers<[1], [0], [0], [1], [0, 0, 1, 1], [], []>} : vector<4x8xbf16>, vector<8x288xbf16>, vector<4x288xf32> -> vector<4x288xf32>
    %13 = arith.addf %8, %12 : vector<4x288xf32>
    %c2 = arith.constant 2 : index
    %c0_14 = arith.constant 0 : index
    %c0_15 = arith.constant 0 : index
    %14 = vector.load %arg2[%c2, %c0_14, %c0_15] : memref<9x4x8xbf16, #tpu.memory_space<vmem>>, vector<1x4x8xbf16>
    %15 = vector.shape_cast %14 : vector<1x4x8xbf16> to vector<4x8xbf16>
    %16 = vector.extract_strided_slice %2 {offsets = [0, 2], sizes = [8, 288], strides = [1, 1]} : vector<8x326xbf16> to vector<8x288xbf16>
    %cst_16 = arith.constant dense<0.000000e+00> : vector<4x288xf32>
    %17 = tpu.matmul %15, %16, %cst_16 {dimension_numbers = #tpu.dot_dimension_numbers<[1], [0], [0], [1], [0, 0, 1, 1], [], []>} : vector<4x8xbf16>, vector<8x288xbf16>, vector<4x288xf32> -> vector<4x288xf32>
    %18 = arith.addf %13, %17 : vector<4x288xf32>
    %c3 = arith.constant 3 : index
    %c0_17 = arith.constant 0 : index
    %c0_18 = arith.constant 0 : index
    %19 = vector.load %arg2[%c3, %c0_17, %c0_18] : memref<9x4x8xbf16, #tpu.memory_space<vmem>>, vector<1x4x8xbf16>
    %20 = vector.shape_cast %19 : vector<1x4x8xbf16> to vector<4x8xbf16>
    %21 = vector.extract_strided_slice %2 {offsets = [0, 18], sizes = [8, 288], strides = [1, 1]} : vector<8x326xbf16> to vector<8x288xbf16>
    %cst_19 = arith.constant dense<0.000000e+00> : vector<4x288xf32>
    %22 = tpu.matmul %20, %21, %cst_19 {dimension_numbers = #tpu.dot_dimension_numbers<[1], [0], [0], [1], [0, 0, 1, 1], [], []>} : vector<4x8xbf16>, vector<8x288xbf16>, vector<4x288xf32> -> vector<4x288xf32>
    %23 = arith.addf %18, %22 : vector<4x288xf32>
    %c4 = arith.constant 4 : index
    %c0_20 = arith.constant 0 : index
    %c0_21 = arith.constant 0 : index
    %24 = vector.load %arg2[%c4, %c0_20, %c0_21] : memref<9x4x8xbf16, #tpu.memory_space<vmem>>, vector<1x4x8xbf16>
    %25 = vector.shape_cast %24 : vector<1x4x8xbf16> to vector<4x8xbf16>
    %26 = vector.extract_strided_slice %2 {offsets = [0, 19], sizes = [8, 288], strides = [1, 1]} : vector<8x326xbf16> to vector<8x288xbf16>
    %cst_22 = arith.constant dense<0.000000e+00> : vector<4x288xf32>
    %27 = tpu.matmul %25, %26, %cst_22 {dimension_numbers = #tpu.dot_dimension_numbers<[1], [0], [0], [1], [0, 0, 1, 1], [], []>} : vector<4x8xbf16>, vector<8x288xbf16>, vector<4x288xf32> -> vector<4x288xf32>
    %28 = arith.addf %23, %27 : vector<4x288xf32>
    %c5 = arith.constant 5 : index
    %c0_23 = arith.constant 0 : index
    %c0_24 = arith.constant 0 : index
    %29 = vector.load %arg2[%c5, %c0_23, %c0_24] : memref<9x4x8xbf16, #tpu.memory_space<vmem>>, vector<1x4x8xbf16>
    %30 = vector.shape_cast %29 : vector<1x4x8xbf16> to vector<4x8xbf16>
    %31 = vector.extract_strided_slice %2 {offsets = [0, 20], sizes = [8, 288], strides = [1, 1]} : vector<8x326xbf16> to vector<8x288xbf16>
    %cst_25 = arith.constant dense<0.000000e+00> : vector<4x288xf32>
    %32 = tpu.matmul %30, %31, %cst_25 {dimension_numbers = #tpu.dot_dimension_numbers<[1], [0], [0], [1], [0, 0, 1, 1], [], []>} : vector<4x8xbf16>, vector<8x288xbf16>, vector<4x288xf32> -> vector<4x288xf32>
    %33 = arith.addf %28, %32 : vector<4x288xf32>
    %c6 = arith.constant 6 : index
    %c0_26 = arith.constant 0 : index
    %c0_27 = arith.constant 0 : index
    %34 = vector.load %arg2[%c6, %c0_26, %c0_27] : memref<9x4x8xbf16, #tpu.memory_space<vmem>>, vector<1x4x8xbf16>
    %35 = vector.shape_cast %34 : vector<1x4x8xbf16> to vector<4x8xbf16>
    %36 = vector.extract_strided_slice %2 {offsets = [0, 36], sizes = [8, 288], strides = [1, 1]} : vector<8x326xbf16> to vector<8x288xbf16>
    %cst_28 = arith.constant dense<0.000000e+00> : vector<4x288xf32>
    %37 = tpu.matmul %35, %36, %cst_28 {dimension_numbers = #tpu.dot_dimension_numbers<[1], [0], [0], [1], [0, 0, 1, 1], [], []>} : vector<4x8xbf16>, vector<8x288xbf16>, vector<4x288xf32> -> vector<4x288xf32>
    %38 = arith.addf %33, %37 : vector<4x288xf32>
    %c7 = arith.constant 7 : index
    %c0_29 = arith.constant 0 : index
    %c0_30 = arith.constant 0 : index
    %39 = vector.load %arg2[%c7, %c0_29, %c0_30] : memref<9x4x8xbf16, #tpu.memory_space<vmem>>, vector<1x4x8xbf16>
    %40 = vector.shape_cast %39 : vector<1x4x8xbf16> to vector<4x8xbf16>
    %41 = vector.extract_strided_slice %2 {offsets = [0, 37], sizes = [8, 288], strides = [1, 1]} : vector<8x326xbf16> to vector<8x288xbf16>
    %cst_31 = arith.constant dense<0.000000e+00> : vector<4x288xf32>
    %42 = tpu.matmul %40, %41, %cst_31 {dimension_numbers = #tpu.dot_dimension_numbers<[1], [0], [0], [1], [0, 0, 1, 1], [], []>} : vector<4x8xbf16>, vector<8x288xbf16>, vector<4x288xf32> -> vector<4x288xf32>
    %43 = arith.addf %38, %42 : vector<4x288xf32>
    %c8 = arith.constant 8 : index
    %c0_32 = arith.constant 0 : index
    %c0_33 = arith.constant 0 : index
    %44 = vector.load %arg2[%c8, %c0_32, %c0_33] : memref<9x4x8xbf16, #tpu.memory_space<vmem>>, vector<1x4x8xbf16>
    %45 = vector.shape_cast %44 : vector<1x4x8xbf16> to vector<4x8xbf16>
    %46 = vector.extract_strided_slice %2 {offsets = [0, 38], sizes = [8, 288], strides = [1, 1]} : vector<8x326xbf16> to vector<8x288xbf16>
    %cst_34 = arith.constant dense<0.000000e+00> : vector<4x288xf32>
    %47 = tpu.matmul %45, %46, %cst_34 {dimension_numbers = #tpu.dot_dimension_numbers<[1], [0], [0], [1], [0, 0, 1, 1], [], []>} : vector<4x8xbf16>, vector<8x288xbf16>, vector<4x288xf32> -> vector<4x288xf32>
    %48 = arith.addf %43, %47 : vector<4x288xf32>
    %49 = vector.broadcast %3 : vector<4x1xf32> to vector<4x288xf32>
    %50 = arith.mulf %48, %49 : vector<4x288xf32>
    %51 = vector.broadcast %4 : vector<4x1xf32> to vector<4x288xf32>
    %52 = arith.addf %50, %51 : vector<4x288xf32>
    %cst_35 = arith.constant 0.000000e+00 : f32
    %53 = vector.broadcast %cst_35 : f32 to vector<4x288xf32>
    %54 = arith.maximumf %52, %53 : vector<4x288xf32>
    %55 = vector.broadcast %0 : vector<1x288xf32> to vector<4x288xf32>
    %56 = arith.mulf %54, %55 : vector<4x288xf32>
    %cst_36 = arith.constant 0.000000e+00 : bf16
    %57 = vector.broadcast %cst_36 : bf16 to vector<4x326xbf16>
    %c0_37 = arith.constant 0 : index
    %c0_38 = arith.constant 0 : index
    %58 = vector.load %arg10[%c0_37, %c0_38] : memref<4x326xbf16, #tpu.memory_space<vmem>>, vector<4x326xbf16>
    tpu.vector_store %arg10[%c0_37, %c0_38], %57 {strides = array<i32>} : memref<4x326xbf16, #tpu.memory_space<vmem>>, vector<4x326xbf16>,
    %59 = arith.truncf %56 : vector<4x288xf32> to vector<4x288xbf16>
    %c0_39 = arith.constant 0 : index
    %c19 = arith.constant 19 : index
    %60 = vector.load %arg10[%c0_39, %c19] : memref<4x326xbf16, #tpu.memory_space<vmem>>, vector<4x288xbf16>
    tpu.vector_store %arg10[%c0_39, %c19], %59 {strides = array<i32>} : memref<4x326xbf16, #tpu.memory_space<vmem>>, vector<4x288xbf16>,
    %c0_40 = arith.constant 0 : index
    %c0_41 = arith.constant 0 : index
    %61 = vector.load %arg10[%c0_40, %c0_41] : memref<4x326xbf16, #tpu.memory_space<vmem>>, vector<4x326xbf16>
    %c0_42 = arith.constant 0 : index
    %c0_43 = arith.constant 0 : index
    %62 = vector.load %arg6[%c0_42, %c0_43] : memref<8x1xf32, #tpu.memory_space<vmem>>, vector<8x1xf32>
    %c0_44 = arith.constant 0 : index
    %c0_45 = arith.constant 0 : index
    %63 = vector.load %arg7[%c0_44, %c0_45] : memref<8x1xf32, #tpu.memory_space<vmem>>, vector<8x1xf32>
    %c0_46 = arith.constant 0 : index
    %c0_47 = arith.constant 0 : index
    %c0_48 = arith.constant 0 : index
    %64 = vector.load %arg5[%c0_46, %c0_47, %c0_48] : memref<9x8x4xbf16, #tpu.memory_space<vmem>>, vector<1x8x4xbf16>
    %65 = vector.shape_cast %64 : vector<1x8x4xbf16> to vector<8x4xbf16>
    %66 = vector.extract_strided_slice %61 {offsets = [0, 0], sizes = [4, 288], strides = [1, 1]} : vector<4x326xbf16> to vector<4x288xbf16>
    %cst_49 = arith.constant dense<0.000000e+00> : vector<8x288xf32>
    %67 = tpu.matmul %65, %66, %cst_49 {dimension_numbers = #tpu.dot_dimension_numbers<[1], [0], [0], [1], [0, 0, 1, 1], [], []>} : vector<8x4xbf16>, vector<4x288xbf16>, vector<8x288xf32> -> vector<8x288xf32>
    %c1_50 = arith.constant 1 : index
    %c0_51 = arith.constant 0 : index
    %c0_52 = arith.constant 0 : index
    %68 = vector.load %arg5[%c1_50, %c0_51, %c0_52] : memref<9x8x4xbf16, #tpu.memory_space<vmem>>, vector<1x8x4xbf16>
    %69 = vector.shape_cast %68 : vector<1x8x4xbf16> to vector<8x4xbf16>
    %70 = vector.extract_strided_slice %61 {offsets = [0, 1], sizes = [4, 288], strides = [1, 1]} : vector<4x326xbf16> to vector<4x288xbf16>
    %cst_53 = arith.constant dense<0.000000e+00> : vector<8x288xf32>
    %71 = tpu.matmul %69, %70, %cst_53 {dimension_numbers = #tpu.dot_dimension_numbers<[1], [0], [0], [1], [0, 0, 1, 1], [], []>} : vector<8x4xbf16>, vector<4x288xbf16>, vector<8x288xf32> -> vector<8x288xf32>
    %72 = arith.addf %67, %71 : vector<8x288xf32>
    %c2_54 = arith.constant 2 : index
    %c0_55 = arith.constant 0 : index
    %c0_56 = arith.constant 0 : index
    %73 = vector.load %arg5[%c2_54, %c0_55, %c0_56] : memref<9x8x4xbf16, #tpu.memory_space<vmem>>, vector<1x8x4xbf16>
    %74 = vector.shape_cast %73 : vector<1x8x4xbf16> to vector<8x4xbf16>
    %75 = vector.extract_strided_slice %61 {offsets = [0, 2], sizes = [4, 288], strides = [1, 1]} : vector<4x326xbf16> to vector<4x288xbf16>
    %cst_57 = arith.constant dense<0.000000e+00> : vector<8x288xf32>
    %76 = tpu.matmul %74, %75, %cst_57 {dimension_numbers = #tpu.dot_dimension_numbers<[1], [0], [0], [1], [0, 0, 1, 1], [], []>} : vector<8x4xbf16>, vector<4x288xbf16>, vector<8x288xf32> -> vector<8x288xf32>
    %77 = arith.addf %72, %76 : vector<8x288xf32>
    %c3_58 = arith.constant 3 : index
    %c0_59 = arith.constant 0 : index
    %c0_60 = arith.constant 0 : index
    %78 = vector.load %arg5[%c3_58, %c0_59, %c0_60] : memref<9x8x4xbf16, #tpu.memory_space<vmem>>, vector<1x8x4xbf16>
    %79 = vector.shape_cast %78 : vector<1x8x4xbf16> to vector<8x4xbf16>
    %80 = vector.extract_strided_slice %61 {offsets = [0, 18], sizes = [4, 288], strides = [1, 1]} : vector<4x326xbf16> to vector<4x288xbf16>
    %cst_61 = arith.constant dense<0.000000e+00> : vector<8x288xf32>
    %81 = tpu.matmul %79, %80, %cst_61 {dimension_numbers = #tpu.dot_dimension_numbers<[1], [0], [0], [1], [0, 0, 1, 1], [], []>} : vector<8x4xbf16>, vector<4x288xbf16>, vector<8x288xf32> -> vector<8x288xf32>
    %82 = arith.addf %77, %81 : vector<8x288xf32>
    %c4_62 = arith.constant 4 : index
    %c0_63 = arith.constant 0 : index
    %c0_64 = arith.constant 0 : index
    %83 = vector.load %arg5[%c4_62, %c0_63, %c0_64] : memref<9x8x4xbf16, #tpu.memory_space<vmem>>, vector<1x8x4xbf16>
    %84 = vector.shape_cast %83 : vector<1x8x4xbf16> to vector<8x4xbf16>
    %85 = vector.extract_strided_slice %61 {offsets = [0, 19], sizes = [4, 288], strides = [1, 1]} : vector<4x326xbf16> to vector<4x288xbf16>
    %cst_65 = arith.constant dense<0.000000e+00> : vector<8x288xf32>
    %86 = tpu.matmul %84, %85, %cst_65 {dimension_numbers = #tpu.dot_dimension_numbers<[1], [0], [0], [1], [0, 0, 1, 1], [], []>} : vector<8x4xbf16>, vector<4x288xbf16>, vector<8x288xf32> -> vector<8x288xf32>
    %87 = arith.addf %82, %86 : vector<8x288xf32>
    %c5_66 = arith.constant 5 : index
    %c0_67 = arith.constant 0 : index
    %c0_68 = arith.constant 0 : index
    %88 = vector.load %arg5[%c5_66, %c0_67, %c0_68] : memref<9x8x4xbf16, #tpu.memory_space<vmem>>, vector<1x8x4xbf16>
    %89 = vector.shape_cast %88 : vector<1x8x4xbf16> to vector<8x4xbf16>
    %90 = vector.extract_strided_slice %61 {offsets = [0, 20], sizes = [4, 288], strides = [1, 1]} : vector<4x326xbf16> to vector<4x288xbf16>
    %cst_69 = arith.constant dense<0.000000e+00> : vector<8x288xf32>
    %91 = tpu.matmul %89, %90, %cst_69 {dimension_numbers = #tpu.dot_dimension_numbers<[1], [0], [0], [1], [0, 0, 1, 1], [], []>} : vector<8x4xbf16>, vector<4x288xbf16>, vector<8x288xf32> -> vector<8x288xf32>
    %92 = arith.addf %87, %91 : vector<8x288xf32>
    %c6_70 = arith.constant 6 : index
    %c0_71 = arith.constant 0 : index
    %c0_72 = arith.constant 0 : index
    %93 = vector.load %arg5[%c6_70, %c0_71, %c0_72] : memref<9x8x4xbf16, #tpu.memory_space<vmem>>, vector<1x8x4xbf16>
    %94 = vector.shape_cast %93 : vector<1x8x4xbf16> to vector<8x4xbf16>
    %95 = vector.extract_strided_slice %61 {offsets = [0, 36], sizes = [4, 288], strides = [1, 1]} : vector<4x326xbf16> to vector<4x288xbf16>
    %cst_73 = arith.constant dense<0.000000e+00> : vector<8x288xf32>
    %96 = tpu.matmul %94, %95, %cst_73 {dimension_numbers = #tpu.dot_dimension_numbers<[1], [0], [0], [1], [0, 0, 1, 1], [], []>} : vector<8x4xbf16>, vector<4x288xbf16>, vector<8x288xf32> -> vector<8x288xf32>
    %97 = arith.addf %92, %96 : vector<8x288xf32>
    %c7_74 = arith.constant 7 : index
    %c0_75 = arith.constant 0 : index
    %c0_76 = arith.constant 0 : index
    %98 = vector.load %arg5[%c7_74, %c0_75, %c0_76] : memref<9x8x4xbf16, #tpu.memory_space<vmem>>, vector<1x8x4xbf16>
    %99 = vector.shape_cast %98 : vector<1x8x4xbf16> to vector<8x4xbf16>
    %100 = vector.extract_strided_slice %61 {offsets = [0, 37], sizes = [4, 288], strides = [1, 1]} : vector<4x326xbf16> to vector<4x288xbf16>
    %cst_77 = arith.constant dense<0.000000e+00> : vector<8x288xf32>
    %101 = tpu.matmul %99, %100, %cst_77 {dimension_numbers = #tpu.dot_dimension_numbers<[1], [0], [0], [1], [0, 0, 1, 1], [], []>} : vector<8x4xbf16>, vector<4x288xbf16>, vector<8x288xf32> -> vector<8x288xf32>
    %102 = arith.addf %97, %101 : vector<8x288xf32>
    %c8_78 = arith.constant 8 : index
    %c0_79 = arith.constant 0 : index
    %c0_80 = arith.constant 0 : index
    %103 = vector.load %arg5[%c8_78, %c0_79, %c0_80] : memref<9x8x4xbf16, #tpu.memory_space<vmem>>, vector<1x8x4xbf16>
    %104 = vector.shape_cast %103 : vector<1x8x4xbf16> to vector<8x4xbf16>
    %105 = vector.extract_strided_slice %61 {offsets = [0, 38], sizes = [4, 288], strides = [1, 1]} : vector<4x326xbf16> to vector<4x288xbf16>
    %cst_81 = arith.constant dense<0.000000e+00> : vector<8x288xf32>
    %106 = tpu.matmul %104, %105, %cst_81 {dimension_numbers = #tpu.dot_dimension_numbers<[1], [0], [0], [1], [0, 0, 1, 1], [], []>} : vector<8x4xbf16>, vector<4x288xbf16>, vector<8x288xf32> -> vector<8x288xf32>
    %107 = arith.addf %102, %106 : vector<8x288xf32>
    %108 = vector.broadcast %62 : vector<8x1xf32> to vector<8x288xf32>
    %109 = arith.mulf %107, %108 : vector<8x288xf32>
    %110 = vector.broadcast %63 : vector<8x1xf32> to vector<8x288xf32>
    %111 = arith.addf %109, %110 : vector<8x288xf32>
    %cst_82 = arith.constant 0.000000e+00 : f32
    %112 = vector.broadcast %cst_82 : f32 to vector<8x288xf32>
    %113 = arith.maximumf %111, %112 : vector<8x288xf32>
    %c0_83 = arith.constant 0 : index
    %c0_84 = arith.constant 0 : index
    %c0_85 = arith.constant 0 : index
    %114 = vector.load %arg9[%c0_83, %c0_84, %c0_85] : memref<1x8x288xf32, #tpu.memory_space<vmem>>, vector<1x8x288xf32>
    %115 = vector.shape_cast %114 : vector<1x8x288xf32> to vector<8x288xf32>
    %116 = vector.shape_cast %113 : vector<8x288xf32> to vector<1x8x288xf32>
    tpu.vector_store %arg9[%c0_83, %c0_84, %c0_85], %116 {strides = array<i32>} : memref<1x8x288xf32, #tpu.memory_space<vmem>>, vector<1x8x288xf32>,
    return
  }
  func.func @transform_0(%arg0: i32) -> (i32, i32, i32) {
    %c0_i32 = arith.constant 0 : i32
    %c0_i32_0 = arith.constant 0 : i32
    %c0_i32_1 = arith.constant 0 : i32
    return %arg0, %c0_i32, %c0_i32_0 : i32, i32, i32
  }
  func.func @transform_1(%arg0: i32) -> (i32, i32, i32) {
    %c0_i32 = arith.constant 0 : i32
    %c0_i32_0 = arith.constant 0 : i32
    %c0_i32_1 = arith.constant 0 : i32
    %c0_i32_2 = arith.constant 0 : i32
    return %c0_i32, %c0_i32_0, %c0_i32_1 : i32, i32, i32
  }
  func.func @transform_2(%arg0: i32) -> (i32, i32) {
    %c0_i32 = arith.constant 0 : i32
    %c0_i32_0 = arith.constant 0 : i32
    %c0_i32_1 = arith.constant 0 : i32
    return %c0_i32, %c0_i32_0 : i32, i32
  }
  func.func @transform_3(%arg0: i32) -> (i32, i32) {
    %c0_i32 = arith.constant 0 : i32
    %c0_i32_0 = arith.constant 0 : i32
    %c0_i32_1 = arith.constant 0 : i32
    return %c0_i32, %c0_i32_0 : i32, i32
  }
  func.func @transform_4(%arg0: i32) -> (i32, i32, i32) {
    %c0_i32 = arith.constant 0 : i32
    %c0_i32_0 = arith.constant 0 : i32
    %c0_i32_1 = arith.constant 0 : i32
    %c0_i32_2 = arith.constant 0 : i32
    return %c0_i32, %c0_i32_0, %c0_i32_1 : i32, i32, i32
  }
  func.func @transform_5(%arg0: i32) -> (i32, i32) {
    %c0_i32 = arith.constant 0 : i32
    %c0_i32_0 = arith.constant 0 : i32
    %c0_i32_1 = arith.constant 0 : i32
    return %c0_i32, %c0_i32_0 : i32, i32
  }
  func.func @transform_6(%arg0: i32) -> (i32, i32) {
    %c0_i32 = arith.constant 0 : i32
    %c0_i32_0 = arith.constant 0 : i32
    %c0_i32_1 = arith.constant 0 : i32
    return %c0_i32, %c0_i32_0 : i32, i32
  }
  func.func @transform_7(%arg0: i32) -> (i32, i32) {
    %c0_i32 = arith.constant 0 : i32
    %c0_i32_0 = arith.constant 0 : i32
    %c0_i32_1 = arith.constant 0 : i32
    return %c0_i32, %c0_i32_0 : i32, i32
  }
  func.func @transform_8(%arg0: i32) -> (i32, i32, i32) {
    %c0_i32 = arith.constant 0 : i32
    %c0_i32_0 = arith.constant 0 : i32
    %c0_i32_1 = arith.constant 0 : i32
    return %arg0, %c0_i32, %c0_i32_0 : i32, i32, i32
  }
}

</mosaic_0001>

<llo_original>
// kernel: up_forward.1
$region0: #{up_forward.1}
  #allocation0 [shape = 'u32[]', space=smem, size = 0x4, offset = 0x4, fixed_abs, tag = 'smem constant byte address 0x4 - core index']
  #allocation1 [shape = 'u32[144,128]{1,0:T(1,128)}', space=vmem, size = 0x12000, scoped, tag = 'internal scratch']
  #allocation2 [shape = 'bf16[4,326]{1,0:T(4,128)(2,1)}', space=vmem, size = 0xc00, scoped, tag = 'scratch operand']
  %s0 = inlined_call_operand.vmem [shape: bf16[2,8,326], index: 0, kind: input, shape index: {}]
  %s1 = inlined_call_operand.vmem [shape: bf16[9,4,8], index: 1, kind: input, shape index: {}]
  %s2 = inlined_call_operand.vmem [shape: f32[4,1], index: 2, kind: input, shape index: {}]
  %s3 = inlined_call_operand.vmem [shape: f32[4,1], index: 3, kind: input, shape index: {}]
  %s4 = inlined_call_operand.vmem [shape: bf16[9,8,4], index: 4, kind: input, shape index: {}]
  %s5 = inlined_call_operand.vmem [shape: f32[8,1], index: 5, kind: input, shape index: {}]
  %s6 = inlined_call_operand.vmem [shape: f32[8,1], index: 6, kind: input, shape index: {}]
  %s7 = inlined_call_operand.vmem [shape: f32[1,288], index: 7, kind: input, shape index: {}]
  %s8 = inlined_call_operand.vmem [shape: f32[2,8,288], index: 8, kind: output, shape index: {}]
  %s9 = sld [smem:[#allocation0]]
  $region65: #{up_forward.1} parent=0
    _
  %s11 = ssub.s32 1, %s9
  %s12 = scalar_select 0, %s11, %s9
  loop: start=0, step=1, limit=4
  $region2: #{up_forward.1} parent=0 // loop_pre_header
    _
  $region3: #{up_forward.1} parent=0 // loop_header
    %s14 = sphi 0, %s18
    %p15 = scmp.ge.s32.totalorder %s14, 4
    %s24 = sphi 0, %s26
    %s27 = sphi 0, %s24
    %s28 = sphi 0, %s27
    %s44 = sphi 0, %s28
    %s48 = sphi 0, %s48
    %s50 = sphi 0, %s48
    %s51 = sphi 0, %s50
    %s65 = sphi 0, %s51
    %s69 = sphi 0, %s69
    %s71 = sphi 0, %s69
    %s72 = sphi 0, %s71
    %s86 = sphi 0, %s72
    %s90 = sphi 0, %s90
    %s92 = sphi 0, %s90
    %s93 = sphi 0, %s92
    %s107 = sphi 0, %s93
    %s111 = sphi 0, %s111
    %s113 = sphi 0, %s111
    %s114 = sphi 0, %s113
    %s128 = sphi 0, %s114
    %s132 = sphi 0, %s132
    %s134 = sphi 0, %s132
    %s135 = sphi 0, %s134
    %s149 = sphi 0, %s135
    %s153 = sphi 0, %s153
    %s155 = sphi 0, %s153
    %s156 = sphi 0, %s155
    %s170 = sphi 0, %s156
    %s174 = sphi 0, %s174
    %s176 = sphi 0, %s174
    %s177 = sphi 0, %s176
    %s191 = sphi 0, %s177
    %s197 = sphi 0, %s199
    %s200 = sphi 0, %s197
    %s201 = sphi 0, %s200
    %s217 = sphi 0, %s201
  $region4: #{up_forward.1} parent=0 // loop_header_branch
    %17 = sbr.rel (%p15) target = $region8
  $region5: #{up_forward.1} parent=0 // loop_body
    %s19 = ssub.s32 %s14, 1
    %s20 = ssub.s32 %s14, 2
    %s21 = sadd.s32 %s14, 1
    %s22 = ssub.s32 %s14, %s21
    %p23 = scmp.eq.s32.totalorder %s22, 0
    %s25 = sadd.s32 %s24, 1
    %s26 = scalar_select %p23, %s24, %s25
    %p29 = pneg %p23
    %p30 = scmp.eq.s32.totalorder %s14, 1
    %p31 = por %p29, %p30
    %p32 = scmp.ne.s32.totalorder %s24, %s27
    %p33 = scmp.eq.s32.totalorder %s14, 0
    %p34 = por %p32, %p33
    %p35 = scmp.ne.s32.totalorder %s24, %s27
    %p36 = scmp.eq.s32.totalorder %s19, 1
    %p37 = por %p35, %p36
    %p38 = scmp.ne.s32.totalorder %s27, %s28
    %p39 = scmp.eq.s32.totalorder %s19, 0
    %p40 = por %p38, %p39
    %p41 = scmp.ne.s32.totalorder %s27, %s28
    %p42 = scmp.eq.s32.totalorder %s20, 1
    %p43 = por %p41, %p42
    %p45 = scmp.ne.s32.totalorder %s28, %s44
    %p46 = scmp.eq.s32.totalorder %s20, 0
    %p47 = por %p45, %p46
    %s49 = sadd.s32 %s48, 1
    %p52 = scmp.eq.s32.totalorder %s14, 1
    %p53 = scmp.ne.s32.totalorder %s48, %s50
    %p54 = scmp.eq.s32.totalorder %s14, 0
    %p55 = por %p53, %p54
    %p56 = scmp.ne.s32.totalorder %s48, %s50
    %p57 = scmp.eq.s32.totalorder %s19, 1
    %p58 = por %p56, %p57
    %p59 = scmp.ne.s32.totalorder %s50, %s51
    %p60 = scmp.eq.s32.totalorder %s19, 0
    %p61 = por %p59, %p60
    %p62 = scmp.ne.s32.totalorder %s50, %s51
    %p63 = scmp.eq.s32.totalorder %s20, 1
    %p64 = por %p62, %p63
    %p66 = scmp.ne.s32.totalorder %s51, %s65
    %p67 = scmp.eq.s32.totalorder %s20, 0
    %p68 = por %p66, %p67
    %s70 = sadd.s32 %s69, 1
    %p73 = scmp.eq.s32.totalorder %s14, 1
    %p74 = scmp.ne.s32.totalorder %s69, %s71
    %p75 = scmp.eq.s32.totalorder %s14, 0
    %p76 = por %p74, %p75
    %p77 = scmp.ne.s32.totalorder %s69, %s71
    %p78 = scmp.eq.s32.totalorder %s19, 1
    %p79 = por %p77, %p78
    %p80 = scmp.ne.s32.totalorder %s71, %s72
    %p81 = scmp.eq.s32.totalorder %s19, 0
    %p82 = por %p80, %p81
    %p83 = scmp.ne.s32.totalorder %s71, %s72
    %p84 = scmp.eq.s32.totalorder %s20, 1
    %p85 = por %p83, %p84
    %p87 = scmp.ne.s32.totalorder %s72, %s86
    %p88 = scmp.eq.s32.totalorder %s20, 0
    %p89 = por %p87, %p88
    %s91 = sadd.s32 %s90, 1
    %p94 = scmp.eq.s32.totalorder %s14, 1
    %p95 = scmp.ne.s32.totalorder %s90, %s92
    %p96 = scmp.eq.s32.totalorder %s14, 0
    %p97 = por %p95, %p96
    %p98 = scmp.ne.s32.totalorder %s90, %s92
    %p99 = scmp.eq.s32.totalorder %s19, 1
    %p100 = por %p98, %p99
    %p101 = scmp.ne.s32.totalorder %s92, %s93
    %p102 = scmp.eq.s32.totalorder %s19, 0
    %p103 = por %p101, %p102
    %p104 = scmp.ne.s32.totalorder %s92, %s93
    %p105 = scmp.eq.s32.totalorder %s20, 1
    %p106 = por %p104, %p105
    %p108 = scmp.ne.s32.totalorder %s93, %s107
    %p109 = scmp.eq.s32.totalorder %s20, 0
    %p110 = por %p108, %p109
    %s112 = sadd.s32 %s111, 1
    %p115 = scmp.eq.s32.totalorder %s14, 1
    %p116 = scmp.ne.s32.totalorder %s111, %s113
    %p117 = scmp.eq.s32.totalorder %s14, 0
    %p118 = por %p116, %p117
    %p119 = scmp.ne.s32.totalorder %s111, %s113
    %p120 = scmp.eq.s32.totalorder %s19, 1
    %p121 = por %p119, %p120
    %p122 = scmp.ne.s32.totalorder %s113, %s114
    %p123 = scmp.eq.s32.totalorder %s19, 0
    %p124 = por %p122, %p123
    %p125 = scmp.ne.s32.totalorder %s113, %s114
    %p126 = scmp.eq.s32.totalorder %s20, 1
    %p127 = por %p125, %p126
    %p129 = scmp.ne.s32.totalorder %s114, %s128
    %p130 = scmp.eq.s32.totalorder %s20, 0
    %p131 = por %p129, %p130
    %s133 = sadd.s32 %s132, 1
    %p136 = scmp.eq.s32.totalorder %s14, 1
    %p137 = scmp.ne.s32.totalorder %s132, %s134
    %p138 = scmp.eq.s32.totalorder %s14, 0
    %p139 = por %p137, %p138
    %p140 = scmp.ne.s32.totalorder %s132, %s134
    %p141 = scmp.eq.s32.totalorder %s19, 1
    %p142 = por %p140, %p141
    %p143 = scmp.ne.s32.totalorder %s134, %s135
    %p144 = scmp.eq.s32.totalorder %s19, 0
    %p145 = por %p143, %p144
    %p146 = scmp.ne.s32.totalorder %s134, %s135
    %p147 = scmp.eq.s32.totalorder %s20, 1
    %p148 = por %p146, %p147
    %p150 = scmp.ne.s32.totalorder %s135, %s149
    %p151 = scmp.eq.s32.totalorder %s20, 0
    %p152 = por %p150, %p151
    %s154 = sadd.s32 %s153, 1
    %p157 = scmp.eq.s32.totalorder %s14, 1
    %p158 = scmp.ne.s32.totalorder %s153, %s155
    %p159 = scmp.eq.s32.totalorder %s14, 0
    %p160 = por %p158, %p159
    %p161 = scmp.ne.s32.totalorder %s153, %s155
    %p162 = scmp.eq.s32.totalorder %s19, 1
    %p163 = por %p161, %p162
    %p164 = scmp.ne.s32.totalorder %s155, %s156
    %p165 = scmp.eq.s32.totalorder %s19, 0
    %p166 = por %p164, %p165
    %p167 = scmp.ne.s32.totalorder %s155, %s156
    %p168 = scmp.eq.s32.totalorder %s20, 1
    %p169 = por %p167, %p168
    %p171 = scmp.ne.s32.totalorder %s156, %s170
    %p172 = scmp.eq.s32.totalorder %s20, 0
    %p173 = por %p171, %p172
    %s175 = sadd.s32 %s174, 1
    %p178 = scmp.eq.s32.totalorder %s14, 1
    %p179 = scmp.ne.s32.totalorder %s174, %s176
    %p180 = scmp.eq.s32.totalorder %s14, 0
    %p181 = por %p179, %p180
    %p182 = scmp.ne.s32.totalorder %s174, %s176
    %p183 = scmp.eq.s32.totalorder %s19, 1
    %p184 = por %p182, %p183
    %p185 = scmp.ne.s32.totalorder %s176, %s177
    %p186 = scmp.eq.s32.totalorder %s19, 0
    %p187 = por %p185, %p186
    %p188 = scmp.ne.s32.totalorder %s176, %s177
    %p189 = scmp.eq.s32.totalorder %s20, 1
    %p190 = por %p188, %p189
    %p192 = scmp.ne.s32.totalorder %s177, %s191
    %p193 = scmp.eq.s32.totalorder %s20, 0
    %p194 = por %p192, %p193
    %s195 = ssub.s32 %s14, %s21
    %p196 = scmp.eq.s32.totalorder %s195, 0
    %s198 = sadd.s32 %s197, 1
    %s199 = scalar_select %p196, %s197, %s198
    %p202 = pneg %p196
    %p203 = scmp.eq.s32.totalorder %s14, 1
    %p204 = por %p202, %p203
    %p205 = scmp.ne.s32.totalorder %s197, %s200
    %p206 = scmp.eq.s32.totalorder %s14, 0
    %p207 = por %p205, %p206
    %p208 = scmp.ne.s32.totalorder %s197, %s200
    %p209 = scmp.eq.s32.totalorder %s19, 1
    %p210 = por %p208, %p209
    %p211 = scmp.ne.s32.totalorder %s200, %s201
    %p212 = scmp.eq.s32.totalorder %s19, 0
    %p213 = por %p211, %p212
    %p214 = scmp.ne.s32.totalorder %s200, %s201
    %p215 = scmp.eq.s32.totalorder %s20, 1
    %p216 = por %p214, %p215
    %p218 = scmp.ne.s32.totalorder %s201, %s217
    %p219 = scmp.eq.s32.totalorder %s20, 0
    %p220 = por %p218, %p219
    %p221 = scmp.le.s32.totalorder 1, %s14
    %p222 = scmp.lt.s32.totalorder %s14, 3
    %p223 = pnand %p221, %p222
    %p224 = pneg %p223
    // Predicated region
    $region9: #{up_forward.1} parent=5 // pred_check
      _
    $region10: #{up_forward.1} parent=5 // pred_check_branch
      %226 = sbr.rel (%p223) target = $region12
    $region11: #{up_forward.1} parent=5 // pred_region
      %s227 = ssub.s32 %s14, 1
      // Predicated region
      $region13: #{up_forward.1} parent=11 // pred_check
        %p228 = pneg %p61
      $region14: #{up_forward.1} parent=11 // pred_check_branch
        %230 = sbr.rel (%p228) target = $region16
      $region15: #{up_forward.1} parent=11 // pred_region
        _
      $region16: #{up_forward.1} parent=11 // pred_fallthru
        _
      // Predicated region
      $region17: #{up_forward.1} parent=11 // pred_check
        %p231 = pneg %p82
      $region18: #{up_forward.1} parent=11 // pred_check_branch
        %233 = sbr.rel (%p231) target = $region20
      $region19: #{up_forward.1} parent=11 // pred_region
        _
      $region20: #{up_forward.1} parent=11 // pred_fallthru
        _
      // Predicated region
      $region21: #{up_forward.1} parent=11 // pred_check
        %p234 = pneg %p103
      $region22: #{up_forward.1} parent=11 // pred_check_branch
        %236 = sbr.rel (%p234) target = $region24
      $region23: #{up_forward.1} parent=11 // pred_region
        _
      $region24: #{up_forward.1} parent=11 // pred_fallthru
        _
      // Predicated region
      $region25: #{up_forward.1} parent=11 // pred_check
        %p237 = pneg %p124
      $region26: #{up_forward.1} parent=11 // pred_check_branch
        %239 = sbr.rel (%p237) target = $region28
      $region27: #{up_forward.1} parent=11 // pred_region
        _
      $region28: #{up_forward.1} parent=11 // pred_fallthru
        _
      // Predicated region
      $region29: #{up_forward.1} parent=11 // pred_check
        %p240 = pneg %p145
      $region30: #{up_forward.1} parent=11 // pred_check_branch
        %242 = sbr.rel (%p240) target = $region32
      $region31: #{up_forward.1} parent=11 // pred_region
        _
      $region32: #{up_forward.1} parent=11 // pred_fallthru
        _
      // Predicated region
      $region33: #{up_forward.1} parent=11 // pred_check
        %p243 = pneg %p166
      $region34: #{up_forward.1} parent=11 // pred_check_branch
        %245 = sbr.rel (%p243) target = $region36
      $region35: #{up_forward.1} parent=11 // pred_region
        _
      $region36: #{up_forward.1} parent=11 // pred_fallthru
        _
      // Predicated region
      $region37: #{up_forward.1} parent=11 // pred_check
        %p246 = pneg %p187
      $region38: #{up_forward.1} parent=11 // pred_check_branch
        %248 = sbr.rel (%p246) target = $region40
      $region39: #{up_forward.1} parent=11 // pred_region
        _
      $region40: #{up_forward.1} parent=11 // pred_fallthru
        _
    $region12: #{up_forward.1} parent=5 // pred_fallthru
      _
    %p249 = scmp.lt.s32.totalorder %s14, 2
    // Predicated region
    $region41: #{up_forward.1} parent=5 // pred_check
      %p250 = pneg %p249
    $region42: #{up_forward.1} parent=5 // pred_check_branch
      %252 = sbr.rel (%p250) target = $region44
    $region43: #{up_forward.1} parent=5 // pred_region
      // Predicated region
      $region45: #{up_forward.1} parent=43 // pred_check
        %p253 = pneg %p34
      $region46: #{up_forward.1} parent=43 // pred_check_branch
        %255 = sbr.rel (%p253) target = $region48
      $region47: #{up_forward.1} parent=43 // pred_region
        %p256 = scmp.lt.s32.totalorder %s14, 1
        %s257 = scalar_select %p256, %s14, 1
        %s258 = smul.addr %s257, 3
        %s259 = smul.addr %s258, 4
        %s260 = scalar_lea.vmem %s0, %s259
      $region48: #{up_forward.1} parent=43 // pred_fallthru
        _
    $region44: #{up_forward.1} parent=5 // pred_fallthru
      _
    %p261 = scmp.le.s32.totalorder 1, %s14
    %p262 = scmp.lt.s32.totalorder %s14, 3
    %p263 = pnand %p261, %p262
    %p264 = pneg %p263
    // Predicated region
    $region49: #{up_forward.1} parent=5 // pred_check
      _
    $region50: #{up_forward.1} parent=5 // pred_check_branch
      %266 = sbr.rel (%p263) target = $region52
    $region51: #{up_forward.1} parent=5 // pred_region
      %s267 = ssub.s32 %s14, 1
      %p268 = scmp.lt.s32.totalorder %s19, 1
      %s269 = scalar_select %p268, %s19, 1
      %s270 = smul.addr %s269, 3
      %s271 = smul.addr %s270, 4
      %s272 = scalar_lea.vmem %s0, %s271
      %p273 = pneg %p40
      %p274 = pneg %p37
      %p275 = pneg %p61
      %p276 = pneg %p58
      %p277 = pneg %p82
      %p278 = pneg %p79
      %p279 = pneg %p103
      %p280 = pneg %p100
      %p281 = pneg %p124
      %p282 = pneg %p121
      %p283 = pneg %p145
      %p284 = pneg %p142
      %p285 = pneg %p166
      %p286 = pneg %p163
      %p287 = pneg %p187
      %p288 = pneg %p184
      %p289 = pneg %p213
      %p290 = pneg %p210
      %p291 = scmp.lt.s32.totalorder %s19, 1
      %s292 = scalar_select %p291, %s19, 1
      %s293 = smul.addr %s292, 3
      %s294 = smul.addr %s293, 8
      %s295 = scalar_lea.vmem %s8, %s294
      %p296 = scmp.lt.s32.totalorder %s19, 1
      %s297 = scalar_select %p296, %s19, 1
      %s298 = smul.addr %s297, 3
      %s299 = smul.addr %s298, 4
      %s300 = scalar_lea.vmem %s0, %s299
      %p301 = scmp.lt.s32.totalorder %s19, 1
      %s302 = scalar_select %p301, %s19, 1
      %s303 = smul.addr %s302, 3
      %s304 = smul.addr %s303, 8
      %s305 = scalar_lea.vmem %s8, %s304
      %v307 = vld [vmem:[%s7] sm:$0x7]
      %v308 = vld [vmem:[%s300] sm:$0xff]
      %v309 = vld [vmem:[%s300 + $0x8] sm:$0xf]
      %v310 = vld [vmem:[%s2] sm:$0xf]
      %v311 = vld [vmem:[%s3] sm:$0xf]
      %v312 = vld [vmem:[%s1] sm:$0x3]
      %s313 = scalar_lea.vmem %s1, 2
      %v314 = vld [vmem:[%s313] sm:$0x3]
      %v317 = vunpack.c.l.b16 %v308
      %v318 = vunpack.c.h.b16 %v308
      %v319 = vunpack.c.l.b16 %v309
      %v320 = vpack.c.b16 %v317, %v317
      %v321 = vpack.c.b16 %v318, %v318
      %v322 = vpack.c.b16 %v319, %v319
      %323 = vrot.lane.b32.xlu0 %v320, 127
      %v324 = vpop.permute.xlu0 %323
      %325 = vrot.lane.b32.xlu0 %v321, 127
      %v326 = vpop.permute.xlu0 %325
      %327 = vrot.lane.b32.xlu0 %v322, 127
      %v328 = vpop.permute.xlu0 %327
      %vm329 = vcmask 1039360
      %v330 = vsel %vm329, %v324, %v326
      %v331 = vsel %vm329, %v326, %v328
      %vm332 = vcmask 64512
      %v334 = vsel %vm332, %v314, 0
      %vm336 = vcmask 1043456
      %v338 = vsel %vm336, %v330, 0
      %v341 = vsel %vm336, %v331, 0
      %v344 = vsel %vm336, %v328, 0
      %346 = vmatprep.subr.bf16.mxu0 %v341
      %347 = vmatpush1.bf16.msra.mxu0 %v338
      %348 = vmatprep.subr.bf16.mxu0 0
      %349 = vmatpush1.bf16.msra.mxu0 0
      %350 = vmatprep.subr.bf16.mxu0 0
      %351 = vmatpush1.bf16.msra.mxu0 0
      %352 = vmatprep.subr.bf16.mxu0 0
      %353 = vmatpush1.bf16.msra.mxu0 0
      %354 = vmatprep.subr.bf16.mxu0 0
      %355 = vmatpush1.bf16.msra.mxu0 0
      %356 = vmatprep.subr.bf16.mxu0 0
      %357 = vmatpush1.bf16.msra.mxu0 0
      %358 = vmatprep.subr.bf16.mxu0 0
      %359 = vmatpush1.bf16.msra.mxu0 0
      %360 = vmatprep.subr.bf16.mxu0 0
      %361 = vmatpush1.bf16.msra.mxu0 0
      %362 = vmatprep.subr.bf16.mxu0 0
      %363 = vmatpush1.bf16.msra.mxu0 0
      %364 = vmatprep.subr.bf16.mxu0 0
      %365 = vmatpush1.bf16.msra.mxu0 0
      %366 = vmatprep.subr.bf16.mxu0 0
      %367 = vmatpush1.bf16.msra.mxu0 0
      %368 = vmatprep.subr.bf16.mxu0 0
      %369 = vmatpush1.bf16.msra.mxu0 0
      %370 = vmatprep.subr.bf16.mxu0 0
      %371 = vmatpush1.bf16.msra.mxu0 0
      %372 = vmatprep.subr.bf16.mxu0 0
      %373 = vmatpush1.bf16.msra.mxu0 0
      %374 = vmatprep.subr.bf16.mxu0 0
      %375 = vmatpush1.bf16.msra.mxu0 0
      %376 = vmatprep.subr.bf16.mxu0 0
      %377 = vmatpush1.bf16.msra.mxu0 0
      %378 = vmatprep.mubr.bf16.mxu0 0
      %379 = vmatmul.mubr.bf16.gmra.mrb[0].mxu0 %v334
      %v380 = vpop.f32.mrb[0].mxu0
      %v381 = vadd.f32 0.0, %v380
      %v382 = vpop.f32.mrb[0].mxu0
      %v383 = vadd.f32 0.0, %v382
      %v384 = vpop.f32.mrb[0].mxu0
      %v385 = vpop.f32.mrb[0].mxu0
      %386 = vdwg.mxu0
      %387 = vmatprep.subr.bf16.mxu0 0
      %388 = vmatpush1.bf16.msra.mxu0 %v344
      %389 = vmatprep.subr.bf16.mxu0 0
      %390 = vmatpush1.bf16.msra.mxu0 0
      %391 = vmatprep.subr.bf16.mxu0 0
      %392 = vmatpush1.bf16.msra.mxu0 0
      %393 = vmatprep.subr.bf16.mxu0 0
      %394 = vmatpush1.bf16.msra.mxu0 0
      %395 = vmatprep.subr.bf16.mxu0 0
      %396 = vmatpush1.bf16.msra.mxu0 0
      %397 = vmatprep.subr.bf16.mxu0 0
      %398 = vmatpush1.bf16.msra.mxu0 0
      %399 = vmatprep.subr.bf16.mxu0 0
      %400 = vmatpush1.bf16.msra.mxu0 0
      %401 = vmatprep.subr.bf16.mxu0 0
      %402 = vmatpush1.bf16.msra.mxu0 0
      %403 = vmatprep.subr.bf16.mxu0 0
      %404 = vmatpush1.bf16.msra.mxu0 0
      %405 = vmatprep.subr.bf16.mxu0 0
      %406 = vmatpush1.bf16.msra.mxu0 0
      %407 = vmatprep.subr.bf16.mxu0 0
      %408 = vmatpush1.bf16.msra.mxu0 0
      %409 = vmatprep.subr.bf16.mxu0 0
      %410 = vmatpush1.bf16.msra.mxu0 0
      %411 = vmatprep.subr.bf16.mxu0 0
      %412 = vmatpush1.bf16.msra.mxu0 0
      %413 = vmatprep.subr.bf16.mxu0 0
      %414 = vmatpush1.bf16.msra.mxu0 0
      %415 = vmatprep.subr.bf16.mxu0 0
      %416 = vmatpush1.bf16.msra.mxu0 0
      %417 = vmatprep.subr.bf16.mxu0 0
      %418 = vmatpush1.bf16.msra.mxu0 0
      %419 = vmatprep.mubr.bf16.mxu0 0
      %420 = vmatmul.mubr.bf16.gmra.mrb[0].mxu0 %v334
      %v421 = vpop.f32.mrb[0].mxu0
      %v422 = vadd.f32 0.0, %v421
      %v423 = vpop.f32.mrb[0].mxu0
      %v424 = vpop.f32.mrb[0].mxu0
      %v425 = vpop.f32.mrb[0].mxu0
      %426 = vdwg.mxu0
      %v428 = vsel %vm332, %v312, 0
      %v431 = vsel %vm336, %v320, 0
      %v434 = vsel %vm336, %v321, 0
      %v437 = vsel %vm336, %v322, 0
      %439 = vmatprep.subr.bf16.mxu0 %v434
      %440 = vmatpush1.bf16.msra.mxu0 %v431
      %441 = vmatprep.subr.bf16.mxu0 0
      %442 = vmatpush1.bf16.msra.mxu0 0
      %443 = vmatprep.subr.bf16.mxu0 0
      %444 = vmatpush1.bf16.msra.mxu0 0
      %445 = vmatprep.subr.bf16.mxu0 0
      %446 = vmatpush1.bf16.msra.mxu0 0
      %447 = vmatprep.subr.bf16.mxu0 0
      %448 = vmatpush1.bf16.msra.mxu0 0
      %449 = vmatprep.subr.bf16.mxu0 0
      %450 = vmatpush1.bf16.msra.mxu0 0
      %451 = vmatprep.subr.bf16.mxu0 0
      %452 = vmatpush1.bf16.msra.mxu0 0
      %453 = vmatprep.subr.bf16.mxu0 0
      %454 = vmatpush1.bf16.msra.mxu0 0
      %455 = vmatprep.subr.bf16.mxu0 0
      %456 = vmatpush1.bf16.msra.mxu0 0
      %457 = vmatprep.subr.bf16.mxu0 0
      %458 = vmatpush1.bf16.msra.mxu0 0
      %459 = vmatprep.subr.bf16.mxu0 0
      %460 = vmatpush1.bf16.msra.mxu0 0
      %461 = vmatprep.subr.bf16.mxu0 0
      %462 = vmatpush1.bf16.msra.mxu0 0
      %463 = vmatprep.subr.bf16.mxu0 0
      %464 = vmatpush1.bf16.msra.mxu0 0
      %465 = vmatprep.subr.bf16.mxu0 0
      %466 = vmatpush1.bf16.msra.mxu0 0
      %467 = vmatprep.subr.bf16.mxu0 0
      %468 = vmatpush1.bf16.msra.mxu0 0
      %469 = vmatprep.subr.bf16.mxu0 0
      %470 = vmatpush1.bf16.msra.mxu0 0
      %471 = vmatprep.mubr.bf16.mxu0 0
      %472 = vmatmul.mubr.bf16.gmra.mrb[0].mxu0 %v428
      %v473 = vpop.f32.mrb[0].mxu0
      %v474 = vadd.f32 %v381, %v473
      %v475 = vpop.f32.mrb[0].mxu0
      %v476 = vadd.f32 %v383, %v475
      %v477 = vpop.f32.mrb[0].mxu0
      %v478 = vpop.f32.mrb[0].mxu0
      %479 = vdwg.mxu0
      %480 = vmatprep.subr.bf16.mxu0 0
      %481 = vmatpush1.bf16.msra.mxu0 %v437
      %482 = vmatprep.subr.bf16.mxu0 0
      %483 = vmatpush1.bf16.msra.mxu0 0
      %484 = vmatprep.subr.bf16.mxu0 0
      %485 = vmatpush1.bf16.msra.mxu0 0
      %486 = vmatprep.subr.bf16.mxu0 0
      %487 = vmatpush1.bf16.msra.mxu0 0
      %488 = vmatprep.subr.bf16.mxu0 0
      %489 = vmatpush1.bf16.msra.mxu0 0
      %490 = vmatprep.subr.bf16.mxu0 0
      %491 = vmatpush1.bf16.msra.mxu0 0
      %492 = vmatprep.subr.bf16.mxu0 0
      %493 = vmatpush1.bf16.msra.mxu0 0
      %494 = vmatprep.subr.bf16.mxu0 0
      %495 = vmatpush1.bf16.msra.mxu0 0
      %496 = vmatprep.subr.bf16.mxu0 0
      %497 = vmatpush1.bf16.msra.mxu0 0
      %498 = vmatprep.subr.bf16.mxu0 0
      %499 = vmatpush1.bf16.msra.mxu0 0
      %500 = vmatprep.subr.bf16.mxu0 0
      %501 = vmatpush1.bf16.msra.mxu0 0
      %502 = vmatprep.subr.bf16.mxu0 0
      %503 = vmatpush1.bf16.msra.mxu0 0
      %504 = vmatprep.subr.bf16.mxu0 0
      %505 = vmatpush1.bf16.msra.mxu0 0
      %506 = vmatprep.subr.bf16.mxu0 0
      %507 = vmatpush1.bf16.msra.mxu0 0
      %508 = vmatprep.subr.bf16.mxu0 0
      %509 = vmatpush1.bf16.msra.mxu0 0
      %510 = vmatprep.subr.bf16.mxu0 0
      %511 = vmatpush1.bf16.msra.mxu0 0
      %512 = vmatprep.mubr.bf16.mxu0 0
      %513 = vmatmul.mubr.bf16.gmra.mrb[0].mxu0 %v428
      %v514 = vpop.f32.mrb[0].mxu0
      %v515 = vadd.f32 %v422, %v514
      %v516 = vpop.f32.mrb[0].mxu0
      %v517 = vpop.f32.mrb[0].mxu0
      %v518 = vpop.f32.mrb[0].mxu0
      %519 = vdwg.mxu0
      %s520 = scalar_lea.vmem %s1, 4
      %v521 = vld [vmem:[%s520] sm:$0x3]
      %522 = vrot.lane.b32.xlu0 %v320, 126
      %v523 = vpop.permute.xlu0 %522
      %524 = vrot.lane.b32.xlu0 %v321, 126
      %v525 = vpop.permute.xlu0 %524
      %526 = vrot.lane.b32.xlu0 %v322, 126
      %v527 = vpop.permute.xlu0 %526
      %vm528 = vcmask 1031168
      %v529 = vsel %vm528, %v523, %v525
      %v530 = vsel %vm528, %v525, %v527
      %v532 = vsel %vm332, %v521, 0
      %v535 = vsel %vm336, %v529, 0
      %v538 = vsel %vm336, %v530, 0
      %v541 = vsel %vm336, %v527, 0
      %543 = vmatprep.subr.bf16.mxu0 %v538
      %544 = vmatpush1.bf16.msra.mxu0 %v535
      %545 = vmatprep.subr.bf16.mxu0 0
      %546 = vmatpush1.bf16.msra.mxu0 0
      %547 = vmatprep.subr.bf16.mxu0 0
      %548 = vmatpush1.bf16.msra.mxu0 0
      %549 = vmatprep.subr.bf16.mxu0 0
      %550 = vmatpush1.bf16.msra.mxu0 0
      %551 = vmatprep.subr.bf16.mxu0 0
      %552 = vmatpush1.bf16.msra.mxu0 0
      %553 = vmatprep.subr.bf16.mxu0 0
      %554 = vmatpush1.bf16.msra.mxu0 0
      %555 = vmatprep.subr.bf16.mxu0 0
      %556 = vmatpush1.bf16.msra.mxu0 0
      %557 = vmatprep.subr.bf16.mxu0 0
      %558 = vmatpush1.bf16.msra.mxu0 0
      %559 = vmatprep.subr.bf16.mxu0 0
      %560 = vmatpush1.bf16.msra.mxu0 0
      %561 = vmatprep.subr.bf16.mxu0 0
      %562 = vmatpush1.bf16.msra.mxu0 0
      %563 = vmatprep.subr.bf16.mxu0 0
      %564 = vmatpush1.bf16.msra.mxu0 0
      %565 = vmatprep.subr.bf16.mxu0 0
      %566 = vmatpush1.bf16.msra.mxu0 0
      %567 = vmatprep.subr.bf16.mxu0 0
      %568 = vmatpush1.bf16.msra.mxu0 0
      %569 = vmatprep.subr.bf16.mxu0 0
      %570 = vmatpush1.bf16.msra.mxu0 0
      %571 = vmatprep.subr.bf16.mxu0 0
      %572 = vmatpush1.bf16.msra.mxu0 0
      %573 = vmatprep.subr.bf16.mxu0 0
      %574 = vmatpush1.bf16.msra.mxu0 0
      %575 = vmatprep.mubr.bf16.mxu0 0
      %576 = vmatmul.mubr.bf16.gmra.mrb[0].mxu0 %v532
      %v577 = vpop.f32.mrb[0].mxu0
      %v578 = vadd.f32 0.0, %v577
      %v579 = vpop.f32.mrb[0].mxu0
      %v580 = vadd.f32 0.0, %v579
      %v581 = vpop.f32.mrb[0].mxu0
      %v582 = vpop.f32.mrb[0].mxu0
      %583 = vdwg.mxu0
      %584 = vmatprep.subr.bf16.mxu0 0
      %585 = vmatpush1.bf16.msra.mxu0 %v541
      %586 = vmatprep.subr.bf16.mxu0 0
      %587 = vmatpush1.bf16.msra.mxu0 0
      %588 = vmatprep.subr.bf16.mxu0 0
      %589 = vmatpush1.bf16.msra.mxu0 0
      %590 = vmatprep.subr.bf16.mxu0 0
      %591 = vmatpush1.bf16.msra.mxu0 0
      %592 = vmatprep.subr.bf16.mxu0 0
      %593 = vmatpush1.bf16.msra.mxu0 0
      %594 = vmatprep.subr.bf16.mxu0 0
      %595 = vmatpush1.bf16.msra.mxu0 0
      %596 = vmatprep.subr.bf16.mxu0 0
      %597 = vmatpush1.bf16.msra.mxu0 0
      %598 = vmatprep.subr.bf16.mxu0 0
      %599 = vmatpush1.bf16.msra.mxu0 0
      %600 = vmatprep.subr.bf16.mxu0 0
      %601 = vmatpush1.bf16.msra.mxu0 0
      %602 = vmatprep.subr.bf16.mxu0 0
      %603 = vmatpush1.bf16.msra.mxu0 0
      %604 = vmatprep.subr.bf16.mxu0 0
      %605 = vmatpush1.bf16.msra.mxu0 0
      %606 = vmatprep.subr.bf16.mxu0 0
      %607 = vmatpush1.bf16.msra.mxu0 0
      %608 = vmatprep.subr.bf16.mxu0 0
      %609 = vmatpush1.bf16.msra.mxu0 0
      %610 = vmatprep.subr.bf16.mxu0 0
      %611 = vmatpush1.bf16.msra.mxu0 0
      %612 = vmatprep.subr.bf16.mxu0 0
      %613 = vmatpush1.bf16.msra.mxu0 0
      %614 = vmatprep.subr.bf16.mxu0 0
      %615 = vmatpush1.bf16.msra.mxu0 0
      %616 = vmatprep.mubr.bf16.mxu0 0
      %617 = vmatmul.mubr.bf16.gmra.mrb[0].mxu0 %v532
      %v618 = vpop.f32.mrb[0].mxu0
      %v619 = vadd.f32 0.0, %v618
      %v620 = vpop.f32.mrb[0].mxu0
      %v621 = vpop.f32.mrb[0].mxu0
      %v622 = vpop.f32.mrb[0].mxu0
      %623 = vdwg.mxu0
      %v624 = vadd.f32 %v474, %v578
      %v625 = vadd.f32 %v476, %v580
      %v626 = vadd.f32 %v515, %v619
      %s627 = scalar_lea.vmem %s1, 6
      %v628 = vld [vmem:[%s627] sm:$0x3]
      %629 = vrot.lane.b32.xlu0 %v320, 110
      %v630 = vpop.permute.xlu0 %629
      %631 = vrot.lane.b32.xlu0 %v321, 110
      %v632 = vpop.permute.xlu0 %631
      %633 = vrot.lane.b32.xlu0 %v322, 110
      %v634 = vpop.permute.xlu0 %633
      %vm635 = vcmask 900096
      %v636 = vsel %vm635, %v630, %v632
      %v637 = vsel %vm635, %v632, %v634
      %v639 = vsel %vm332, %v628, 0
      %v642 = vsel %vm336, %v636, 0
      %v645 = vsel %vm336, %v637, 0
      %v648 = vsel %vm336, %v634, 0
      %650 = vmatprep.subr.bf16.mxu0 %v645
      %651 = vmatpush1.bf16.msra.mxu0 %v642
      %652 = vmatprep.subr.bf16.mxu0 0
      %653 = vmatpush1.bf16.msra.mxu0 0
      %654 = vmatprep.subr.bf16.mxu0 0
      %655 = vmatpush1.bf16.msra.mxu0 0
      %656 = vmatprep.subr.bf16.mxu0 0
      %657 = vmatpush1.bf16.msra.mxu0 0
      %658 = vmatprep.subr.bf16.mxu0 0
      %659 = vmatpush1.bf16.msra.mxu0 0
      %660 = vmatprep.subr.bf16.mxu0 0
      %661 = vmatpush1.bf16.msra.mxu0 0
      %662 = vmatprep.subr.bf16.mxu0 0
      %663 = vmatpush1.bf16.msra.mxu0 0
      %664 = vmatprep.subr.bf16.mxu0 0
      %665 = vmatpush1.bf16.msra.mxu0 0
      %666 = vmatprep.subr.bf16.mxu0 0
      %667 = vmatpush1.bf16.msra.mxu0 0
      %668 = vmatprep.subr.bf16.mxu0 0
      %669 = vmatpush1.bf16.msra.mxu0 0
      %670 = vmatprep.subr.bf16.mxu0 0
      %671 = vmatpush1.bf16.msra.mxu0 0
      %672 = vmatprep.subr.bf16.mxu0 0
      %673 = vmatpush1.bf16.msra.mxu0 0
      %674 = vmatprep.subr.bf16.mxu0 0
      %675 = vmatpush1.bf16.msra.mxu0 0
      %676 = vmatprep.subr.bf16.mxu0 0
      %677 = vmatpush1.bf16.msra.mxu0 0
      %678 = vmatprep.subr.bf16.mxu0 0
      %679 = vmatpush1.bf16.msra.mxu0 0
      %680 = vmatprep.subr.bf16.mxu0 0
      %681 = vmatpush1.bf16.msra.mxu0 0
      %682 = vmatprep.mubr.bf16.mxu0 0
      %683 = vmatmul.mubr.bf16.gmra.mrb[0].mxu0 %v639
      %v684 = vpop.f32.mrb[0].mxu0
      %v685 = vadd.f32 0.0, %v684
      %v686 = vpop.f32.mrb[0].mxu0
      %v687 = vadd.f32 0.0, %v686
      %v688 = vpop.f32.mrb[0].mxu0
      %v689 = vpop.f32.mrb[0].mxu0
      %690 = vdwg.mxu0
      %691 = vmatprep.subr.bf16.mxu0 0
      %692 = vmatpush1.bf16.msra.mxu0 %v648
      %693 = vmatprep.subr.bf16.mxu0 0
      %694 = vmatpush1.bf16.msra.mxu0 0
      %695 = vmatprep.subr.bf16.mxu0 0
      %696 = vmatpush1.bf16.msra.mxu0 0
      %697 = vmatprep.subr.bf16.mxu0 0
      %698 = vmatpush1.bf16.msra.mxu0 0
      %699 = vmatprep.subr.bf16.mxu0 0
      %700 = vmatpush1.bf16.msra.mxu0 0
      %701 = vmatprep.subr.bf16.mxu0 0
      %702 = vmatpush1.bf16.msra.mxu0 0
      %703 = vmatprep.subr.bf16.mxu0 0
      %704 = vmatpush1.bf16.msra.mxu0 0
      %705 = vmatprep.subr.bf16.mxu0 0
      %706 = vmatpush1.bf16.msra.mxu0 0
      %707 = vmatprep.subr.bf16.mxu0 0
      %708 = vmatpush1.bf16.msra.mxu0 0
      %709 = vmatprep.subr.bf16.mxu0 0
      %710 = vmatpush1.bf16.msra.mxu0 0
      %711 = vmatprep.subr.bf16.mxu0 0
      %712 = vmatpush1.bf16.msra.mxu0 0
      %713 = vmatprep.subr.bf16.mxu0 0
      %714 = vmatpush1.bf16.msra.mxu0 0
      %715 = vmatprep.subr.bf16.mxu0 0
      %716 = vmatpush1.bf16.msra.mxu0 0
      %717 = vmatprep.subr.bf16.mxu0 0
      %718 = vmatpush1.bf16.msra.mxu0 0
      %719 = vmatprep.subr.bf16.mxu0 0
      %720 = vmatpush1.bf16.msra.mxu0 0
      %721 = vmatprep.subr.bf16.mxu0 0
      %722 = vmatpush1.bf16.msra.mxu0 0
      %723 = vmatprep.mubr.bf16.mxu0 0
      %724 = vmatmul.mubr.bf16.gmra.mrb[0].mxu0 %v639
      %v725 = vpop.f32.mrb[0].mxu0
      %v726 = vadd.f32 0.0, %v725
      %v727 = vpop.f32.mrb[0].mxu0
      %v728 = vpop.f32.mrb[0].mxu0
      %v729 = vpop.f32.mrb[0].mxu0
      %730 = vdwg.mxu0
      %v731 = vadd.f32 %v624, %v685
      %v732 = vadd.f32 %v625, %v687
      %v733 = vadd.f32 %v626, %v726
      %s734 = scalar_lea.vmem %s1, 8
      %v735 = vld [vmem:[%s734] sm:$0x3]
      %736 = vrot.lane.b32.xlu0 %v320, 109
      %v737 = vpop.permute.xlu0 %736
      %738 = vrot.lane.b32.xlu0 %v321, 109
      %v739 = vpop.permute.xlu0 %738
      %740 = vrot.lane.b32.xlu0 %v322, 109
      %v741 = vpop.permute.xlu0 %740
      %vm742 = vcmask 891904
      %v743 = vsel %vm742, %v737, %v739
      %v744 = vsel %vm742, %v739, %v741
      %v746 = vsel %vm332, %v735, 0
      %v749 = vsel %vm336, %v743, 0
      %v752 = vsel %vm336, %v744, 0
      %v755 = vsel %vm336, %v741, 0
      %757 = vmatprep.subr.bf16.mxu0 %v752
      %758 = vmatpush1.bf16.msra.mxu0 %v749
      %759 = vmatprep.subr.bf16.mxu0 0
      %760 = vmatpush1.bf16.msra.mxu0 0
      %761 = vmatprep.subr.bf16.mxu0 0
      %762 = vmatpush1.bf16.msra.mxu0 0
      %763 = vmatprep.subr.bf16.mxu0 0
      %764 = vmatpush1.bf16.msra.mxu0 0
      %765 = vmatprep.subr.bf16.mxu0 0
      %766 = vmatpush1.bf16.msra.mxu0 0
      %767 = vmatprep.subr.bf16.mxu0 0
      %768 = vmatpush1.bf16.msra.mxu0 0
      %769 = vmatprep.subr.bf16.mxu0 0
      %770 = vmatpush1.bf16.msra.mxu0 0
      %771 = vmatprep.subr.bf16.mxu0 0
      %772 = vmatpush1.bf16.msra.mxu0 0
      %773 = vmatprep.subr.bf16.mxu0 0
      %774 = vmatpush1.bf16.msra.mxu0 0
      %775 = vmatprep.subr.bf16.mxu0 0
      %776 = vmatpush1.bf16.msra.mxu0 0
      %777 = vmatprep.subr.bf16.mxu0 0
      %778 = vmatpush1.bf16.msra.mxu0 0
      %779 = vmatprep.subr.bf16.mxu0 0
      %780 = vmatpush1.bf16.msra.mxu0 0
      %781 = vmatprep.subr.bf16.mxu0 0
      %782 = vmatpush1.bf16.msra.mxu0 0
      %783 = vmatprep.subr.bf16.mxu0 0
      %784 = vmatpush1.bf16.msra.mxu0 0
      %785 = vmatprep.subr.bf16.mxu0 0
      %786 = vmatpush1.bf16.msra.mxu0 0
      %787 = vmatprep.subr.bf16.mxu0 0
      %788 = vmatpush1.bf16.msra.mxu0 0
      %789 = vmatprep.mubr.bf16.mxu0 0
      %790 = vmatmul.mubr.bf16.gmra.mrb[0].mxu0 %v746
      %v791 = vpop.f32.mrb[0].mxu0
      %v792 = vadd.f32 0.0, %v791
      %v793 = vpop.f32.mrb[0].mxu0
      %v794 = vadd.f32 0.0, %v793
      %v795 = vpop.f32.mrb[0].mxu0
      %v796 = vpop.f32.mrb[0].mxu0
      %797 = vdwg.mxu0
      %798 = vmatprep.subr.bf16.mxu0 0
      %799 = vmatpush1.bf16.msra.mxu0 %v755
      %800 = vmatprep.subr.bf16.mxu0 0
      %801 = vmatpush1.bf16.msra.mxu0 0
      %802 = vmatprep.subr.bf16.mxu0 0
      %803 = vmatpush1.bf16.msra.mxu0 0
      %804 = vmatprep.subr.bf16.mxu0 0
      %805 = vmatpush1.bf16.msra.mxu0 0
      %806 = vmatprep.subr.bf16.mxu0 0
      %807 = vmatpush1.bf16.msra.mxu0 0
      %808 = vmatprep.subr.bf16.mxu0 0
      %809 = vmatpush1.bf16.msra.mxu0 0
      %810 = vmatprep.subr.bf16.mxu0 0
      %811 = vmatpush1.bf16.msra.mxu0 0
      %812 = vmatprep.subr.bf16.mxu0 0
      %813 = vmatpush1.bf16.msra.mxu0 0
      %814 = vmatprep.subr.bf16.mxu0 0
      %815 = vmatpush1.bf16.msra.mxu0 0
      %816 = vmatprep.subr.bf16.mxu0 0
      %817 = vmatpush1.bf16.msra.mxu0 0
      %818 = vmatprep.subr.bf16.mxu0 0
      %819 = vmatpush1.bf16.msra.mxu0 0
      %820 = vmatprep.subr.bf16.mxu0 0
      %821 = vmatpush1.bf16.msra.mxu0 0
      %822 = vmatprep.subr.bf16.mxu0 0
      %823 = vmatpush1.bf16.msra.mxu0 0
      %824 = vmatprep.subr.bf16.mxu0 0
      %825 = vmatpush1.bf16.msra.mxu0 0
      %826 = vmatprep.subr.bf16.mxu0 0
      %827 = vmatpush1.bf16.msra.mxu0 0
      %828 = vmatprep.subr.bf16.mxu0 0
      %829 = vmatpush1.bf16.msra.mxu0 0
      %830 = vmatprep.mubr.bf16.mxu0 0
      %831 = vmatmul.mubr.bf16.gmra.mrb[0].mxu0 %v746
      %v832 = vpop.f32.mrb[0].mxu0
      %v833 = vadd.f32 0.0, %v832
      %v834 = vpop.f32.mrb[0].mxu0
      %v835 = vpop.f32.mrb[0].mxu0
      %v836 = vpop.f32.mrb[0].mxu0
      %837 = vdwg.mxu0
      %v838 = vadd.f32 %v731, %v792
      %v839 = vadd.f32 %v732, %v794
      %v840 = vadd.f32 %v733, %v833
      %s841 = scalar_lea.vmem %s1, 10
      %v842 = vld [vmem:[%s841] sm:$0x3]
      %843 = vrot.lane.b32.xlu0 %v320, 108
      %v844 = vpop.permute.xlu0 %843
      %845 = vrot.lane.b32.xlu0 %v321, 108
      %v846 = vpop.permute.xlu0 %845
      %847 = vrot.lane.b32.xlu0 %v322, 108
      %v848 = vpop.permute.xlu0 %847
      %vm849 = vcmask 883712
      %v850 = vsel %vm849, %v844, %v846
      %v851 = vsel %vm849, %v846, %v848
      %v853 = vsel %vm332, %v842, 0
      %v856 = vsel %vm336, %v850, 0
      %v859 = vsel %vm336, %v851, 0
      %v862 = vsel %vm336, %v848, 0
      %864 = vmatprep.subr.bf16.mxu0 %v859
      %865 = vmatpush1.bf16.msra.mxu0 %v856
      %866 = vmatprep.subr.bf16.mxu0 0
      %867 = vmatpush1.bf16.msra.mxu0 0
      %868 = vmatprep.subr.bf16.mxu0 0
      %869 = vmatpush1.bf16.msra.mxu0 0
      %870 = vmatprep.subr.bf16.mxu0 0
      %871 = vmatpush1.bf16.msra.mxu0 0
      %872 = vmatprep.subr.bf16.mxu0 0
      %873 = vmatpush1.bf16.msra.mxu0 0
      %874 = vmatprep.subr.bf16.mxu0 0
      %875 = vmatpush1.bf16.msra.mxu0 0
      %876 = vmatprep.subr.bf16.mxu0 0
      %877 = vmatpush1.bf16.msra.mxu0 0
      %878 = vmatprep.subr.bf16.mxu0 0
      %879 = vmatpush1.bf16.msra.mxu0 0
      %880 = vmatprep.subr.bf16.mxu0 0
      %881 = vmatpush1.bf16.msra.mxu0 0
      %882 = vmatprep.subr.bf16.mxu0 0
      %883 = vmatpush1.bf16.msra.mxu0 0
      %884 = vmatprep.subr.bf16.mxu0 0
      %885 = vmatpush1.bf16.msra.mxu0 0
      %886 = vmatprep.subr.bf16.mxu0 0
      %887 = vmatpush1.bf16.msra.mxu0 0
      %888 = vmatprep.subr.bf16.mxu0 0
      %889 = vmatpush1.bf16.msra.mxu0 0
      %890 = vmatprep.subr.bf16.mxu0 0
      %891 = vmatpush1.bf16.msra.mxu0 0
      %892 = vmatprep.subr.bf16.mxu0 0
      %893 = vmatpush1.bf16.msra.mxu0 0
      %894 = vmatprep.subr.bf16.mxu0 0
      %895 = vmatpush1.bf16.msra.mxu0 0
      %896 = vmatprep.mubr.bf16.mxu0 0
      %897 = vmatmul.mubr.bf16.gmra.mrb[0].mxu0 %v853
      %v898 = vpop.f32.mrb[0].mxu0
      %v899 = vadd.f32 0.0, %v898
      %v900 = vpop.f32.mrb[0].mxu0
      %v901 = vadd.f32 0.0, %v900
      %v902 = vpop.f32.mrb[0].mxu0
      %v903 = vpop.f32.mrb[0].mxu0
      %904 = vdwg.mxu0
      %905 = vmatprep.subr.bf16.mxu0 0
      %906 = vmatpush1.bf16.msra.mxu0 %v862
      %907 = vmatprep.subr.bf16.mxu0 0
      %908 = vmatpush1.bf16.msra.mxu0 0
      %909 = vmatprep.subr.bf16.mxu0 0
      %910 = vmatpush1.bf16.msra.mxu0 0
      %911 = vmatprep.subr.bf16.mxu0 0
      %912 = vmatpush1.bf16.msra.mxu0 0
      %913 = vmatprep.subr.bf16.mxu0 0
      %914 = vmatpush1.bf16.msra.mxu0 0
      %915 = vmatprep.subr.bf16.mxu0 0
      %916 = vmatpush1.bf16.msra.mxu0 0
      %917 = vmatprep.subr.bf16.mxu0 0
      %918 = vmatpush1.bf16.msra.mxu0 0
      %919 = vmatprep.subr.bf16.mxu0 0
      %920 = vmatpush1.bf16.msra.mxu0 0
      %921 = vmatprep.subr.bf16.mxu0 0
      %922 = vmatpush1.bf16.msra.mxu0 0
      %923 = vmatprep.subr.bf16.mxu0 0
      %924 = vmatpush1.bf16.msra.mxu0 0
      %925 = vmatprep.subr.bf16.mxu0 0
      %926 = vmatpush1.bf16.msra.mxu0 0
      %927 = vmatprep.subr.bf16.mxu0 0
      %928 = vmatpush1.bf16.msra.mxu0 0
      %929 = vmatprep.subr.bf16.mxu0 0
      %930 = vmatpush1.bf16.msra.mxu0 0
      %931 = vmatprep.subr.bf16.mxu0 0
      %932 = vmatpush1.bf16.msra.mxu0 0
      %933 = vmatprep.subr.bf16.mxu0 0
      %934 = vmatpush1.bf16.msra.mxu0 0
      %935 = vmatprep.subr.bf16.mxu0 0
      %936 = vmatpush1.bf16.msra.mxu0 0
      %937 = vmatprep.mubr.bf16.mxu0 0
      %938 = vmatmul.mubr.bf16.gmra.mrb[0].mxu0 %v853
      %v939 = vpop.f32.mrb[0].mxu0
      %v940 = vadd.f32 0.0, %v939
      %v941 = vpop.f32.mrb[0].mxu0
      %v942 = vpop.f32.mrb[0].mxu0
      %v943 = vpop.f32.mrb[0].mxu0
      %944 = vdwg.mxu0
      %v945 = vadd.f32 %v838, %v899
      %v946 = vadd.f32 %v839, %v901
      %v947 = vadd.f32 %v840, %v940
      %s948 = scalar_lea.vmem %s1, 12
      %v949 = vld [vmem:[%s948] sm:$0x3]
      %950 = vrot.lane.b32.xlu0 %v320, 92
      %v951 = vpop.permute.xlu0 %950
      %952 = vrot.lane.b32.xlu0 %v321, 92
      %v953 = vpop.permute.xlu0 %952
      %954 = vrot.lane.b32.xlu0 %v322, 92
      %v955 = vpop.permute.xlu0 %954
      %vm956 = vcmask 752640
      %v957 = vsel %vm956, %v951, %v953
      %v958 = vsel %vm956, %v953, %v955
      %v960 = vsel %vm332, %v949, 0
      %v963 = vsel %vm336, %v957, 0
      %v966 = vsel %vm336, %v958, 0
      %v969 = vsel %vm336, %v955, 0
      %971 = vmatprep.subr.bf16.mxu0 %v966
      %972 = vmatpush1.bf16.msra.mxu0 %v963
      %973 = vmatprep.subr.bf16.mxu0 0
      %974 = vmatpush1.bf16.msra.mxu0 0
      %975 = vmatprep.subr.bf16.mxu0 0
      %976 = vmatpush1.bf16.msra.mxu0 0
      %977 = vmatprep.subr.bf16.mxu0 0
      %978 = vmatpush1.bf16.msra.mxu0 0
      %979 = vmatprep.subr.bf16.mxu0 0
      %980 = vmatpush1.bf16.msra.mxu0 0
      %981 = vmatprep.subr.bf16.mxu0 0
      %982 = vmatpush1.bf16.msra.mxu0 0
      %983 = vmatprep.subr.bf16.mxu0 0
      %984 = vmatpush1.bf16.msra.mxu0 0
      %985 = vmatprep.subr.bf16.mxu0 0
      %986 = vmatpush1.bf16.msra.mxu0 0
      %987 = vmatprep.subr.bf16.mxu0 0
      %988 = vmatpush1.bf16.msra.mxu0 0
      %989 = vmatprep.subr.bf16.mxu0 0
      %990 = vmatpush1.bf16.msra.mxu0 0
      %991 = vmatprep.subr.bf16.mxu0 0
      %992 = vmatpush1.bf16.msra.mxu0 0
      %993 = vmatprep.subr.bf16.mxu0 0
      %994 = vmatpush1.bf16.msra.mxu0 0
      %995 = vmatprep.subr.bf16.mxu0 0
      %996 = vmatpush1.bf16.msra.mxu0 0
      %997 = vmatprep.subr.bf16.mxu0 0
      %998 = vmatpush1.bf16.msra.mxu0 0
      %999 = vmatprep.subr.bf16.mxu0 0
      %1000 = vmatpush1.bf16.msra.mxu0 0
      %1001 = vmatprep.subr.bf16.mxu0 0
      %1002 = vmatpush1.bf16.msra.mxu0 0
      %1003 = vmatprep.mubr.bf16.mxu0 0
      %1004 = vmatmul.mubr.bf16.gmra.mrb[0].mxu0 %v960
      %v1005 = vpop.f32.mrb[0].mxu0
      %v1006 = vadd.f32 0.0, %v1005
      %v1007 = vpop.f32.mrb[0].mxu0
      %v1008 = vadd.f32 0.0, %v1007
      %v1009 = vpop.f32.mrb[0].mxu0
      %v1010 = vpop.f32.mrb[0].mxu0
      %1011 = vdwg.mxu0
      %1012 = vmatprep.subr.bf16.mxu0 0
      %1013 = vmatpush1.bf16.msra.mxu0 %v969
      %1014 = vmatprep.subr.bf16.mxu0 0
      %1015 = vmatpush1.bf16.msra.mxu0 0
      %1016 = vmatprep.subr.bf16.mxu0 0
      %1017 = vmatpush1.bf16.msra.mxu0 0
      %1018 = vmatprep.subr.bf16.mxu0 0
      %1019 = vmatpush1.bf16.msra.mxu0 0
      %1020 = vmatprep.subr.bf16.mxu0 0
      %1021 = vmatpush1.bf16.msra.mxu0 0
      %1022 = vmatprep.subr.bf16.mxu0 0
      %1023 = vmatpush1.bf16.msra.mxu0 0
      %1024 = vmatprep.subr.bf16.mxu0 0
      %1025 = vmatpush1.bf16.msra.mxu0 0
      %1026 = vmatprep.subr.bf16.mxu0 0
      %1027 = vmatpush1.bf16.msra.mxu0 0
      %1028 = vmatprep.subr.bf16.mxu0 0
      %1029 = vmatpush1.bf16.msra.mxu0 0
      %1030 = vmatprep.subr.bf16.mxu0 0
      %1031 = vmatpush1.bf16.msra.mxu0 0
      %1032 = vmatprep.subr.bf16.mxu0 0
      %1033 = vmatpush1.bf16.msra.mxu0 0
      %1034 = vmatprep.subr.bf16.mxu0 0
      %1035 = vmatpush1.bf16.msra.mxu0 0
      %1036 = vmatprep.subr.bf16.mxu0 0
      %1037 = vmatpush1.bf16.msra.mxu0 0
      %1038 = vmatprep.subr.bf16.mxu0 0
      %1039 = vmatpush1.bf16.msra.mxu0 0
      %1040 = vmatprep.subr.bf16.mxu0 0
      %1041 = vmatpush1.bf16.msra.mxu0 0
      %1042 = vmatprep.subr.bf16.mxu0 0
      %1043 = vmatpush1.bf16.msra.mxu0 0
      %1044 = vmatprep.mubr.bf16.mxu0 0
      %1045 = vmatmul.mubr.bf16.gmra.mrb[0].mxu0 %v960
      %v1046 = vpop.f32.mrb[0].mxu0
      %v1047 = vadd.f32 0.0, %v1046
      %v1048 = vpop.f32.mrb[0].mxu0
      %v1049 = vpop.f32.mrb[0].mxu0
      %v1050 = vpop.f32.mrb[0].mxu0
      %1051 = vdwg.mxu0
      %v1052 = vadd.f32 %v945, %v1006
      %v1053 = vadd.f32 %v946, %v1008
      %v1054 = vadd.f32 %v947, %v1047
      %s1055 = scalar_lea.vmem %s1, 14
      %v1056 = vld [vmem:[%s1055] sm:$0x3]
      %1057 = vrot.lane.b32.xlu0 %v320, 91
      %v1058 = vpop.permute.xlu0 %1057
      %1059 = vrot.lane.b32.xlu0 %v321, 91
      %v1060 = vpop.permute.xlu0 %1059
      %1061 = vrot.lane.b32.xlu0 %v322, 91
      %v1062 = vpop.permute.xlu0 %1061
      %vm1063 = vcmask 744448
      %v1064 = vsel %vm1063, %v1058, %v1060
      %v1065 = vsel %vm1063, %v1060, %v1062
      %v1067 = vsel %vm332, %v1056, 0
      %v1070 = vsel %vm336, %v1064, 0
      %v1073 = vsel %vm336, %v1065, 0
      %v1076 = vsel %vm336, %v1062, 0
      %1078 = vmatprep.subr.bf16.mxu0 %v1073
      %1079 = vmatpush1.bf16.msra.mxu0 %v1070
      %1080 = vmatprep.subr.bf16.mxu0 0
      %1081 = vmatpush1.bf16.msra.mxu0 0
      %1082 = vmatprep.subr.bf16.mxu0 0
      %1083 = vmatpush1.bf16.msra.mxu0 0
      %1084 = vmatprep.subr.bf16.mxu0 0
      %1085 = vmatpush1.bf16.msra.mxu0 0
      %1086 = vmatprep.subr.bf16.mxu0 0
      %1087 = vmatpush1.bf16.msra.mxu0 0
      %1088 = vmatprep.subr.bf16.mxu0 0
      %1089 = vmatpush1.bf16.msra.mxu0 0
      %1090 = vmatprep.subr.bf16.mxu0 0
      %1091 = vmatpush1.bf16.msra.mxu0 0
      %1092 = vmatprep.subr.bf16.mxu0 0
      %1093 = vmatpush1.bf16.msra.mxu0 0
      %1094 = vmatprep.subr.bf16.mxu0 0
      %1095 = vmatpush1.bf16.msra.mxu0 0
      %1096 = vmatprep.subr.bf16.mxu0 0
      %1097 = vmatpush1.bf16.msra.mxu0 0
      %1098 = vmatprep.subr.bf16.mxu0 0
      %1099 = vmatpush1.bf16.msra.mxu0 0
      %1100 = vmatprep.subr.bf16.mxu0 0
      %1101 = vmatpush1.bf16.msra.mxu0 0
      %1102 = vmatprep.subr.bf16.mxu0 0
      %1103 = vmatpush1.bf16.msra.mxu0 0
      %1104 = vmatprep.subr.bf16.mxu0 0
      %1105 = vmatpush1.bf16.msra.mxu0 0
      %1106 = vmatprep.subr.bf16.mxu0 0
      %1107 = vmatpush1.bf16.msra.mxu0 0
      %1108 = vmatprep.subr.bf16.mxu0 0
      %1109 = vmatpush1.bf16.msra.mxu0 0
      %1110 = vmatprep.mubr.bf16.mxu0 0
      %1111 = vmatmul.mubr.bf16.gmra.mrb[0].mxu0 %v1067
      %v1112 = vpop.f32.mrb[0].mxu0
      %v1113 = vadd.f32 0.0, %v1112
      %v1114 = vpop.f32.mrb[0].mxu0
      %v1115 = vadd.f32 0.0, %v1114
      %v1116 = vpop.f32.mrb[0].mxu0
      %v1117 = vpop.f32.mrb[0].mxu0
      %1118 = vdwg.mxu0
      %1119 = vmatprep.subr.bf16.mxu0 0
      %1120 = vmatpush1.bf16.msra.mxu0 %v1076
      %1121 = vmatprep.subr.bf16.mxu0 0
      %1122 = vmatpush1.bf16.msra.mxu0 0
      %1123 = vmatprep.subr.bf16.mxu0 0
      %1124 = vmatpush1.bf16.msra.mxu0 0
      %1125 = vmatprep.subr.bf16.mxu0 0
      %1126 = vmatpush1.bf16.msra.mxu0 0
      %1127 = vmatprep.subr.bf16.mxu0 0
      %1128 = vmatpush1.bf16.msra.mxu0 0
      %1129 = vmatprep.subr.bf16.mxu0 0
      %1130 = vmatpush1.bf16.msra.mxu0 0
      %1131 = vmatprep.subr.bf16.mxu0 0
      %1132 = vmatpush1.bf16.msra.mxu0 0
      %1133 = vmatprep.subr.bf16.mxu0 0
      %1134 = vmatpush1.bf16.msra.mxu0 0
      %1135 = vmatprep.subr.bf16.mxu0 0
      %1136 = vmatpush1.bf16.msra.mxu0 0
      %1137 = vmatprep.subr.bf16.mxu0 0
      %1138 = vmatpush1.bf16.msra.mxu0 0
      %1139 = vmatprep.subr.bf16.mxu0 0
      %1140 = vmatpush1.bf16.msra.mxu0 0
      %1141 = vmatprep.subr.bf16.mxu0 0
      %1142 = vmatpush1.bf16.msra.mxu0 0
      %1143 = vmatprep.subr.bf16.mxu0 0
      %1144 = vmatpush1.bf16.msra.mxu0 0
      %1145 = vmatprep.subr.bf16.mxu0 0
      %1146 = vmatpush1.bf16.msra.mxu0 0
      %1147 = vmatprep.subr.bf16.mxu0 0
      %1148 = vmatpush1.bf16.msra.mxu0 0
      %1149 = vmatprep.subr.bf16.mxu0 0
      %1150 = vmatpush1.bf16.msra.mxu0 0
      %1151 = vmatprep.mubr.bf16.mxu0 0
      %1152 = vmatmul.mubr.bf16.gmra.mrb[0].mxu0 %v1067
      %v1153 = vpop.f32.mrb[0].mxu0
      %v1154 = vadd.f32 0.0, %v1153
      %v1155 = vpop.f32.mrb[0].mxu0
      %v1156 = vpop.f32.mrb[0].mxu0
      %v1157 = vpop.f32.mrb[0].mxu0
      %1158 = vdwg.mxu0
      %v1159 = vadd.f32 %v1052, %v1113
      %v1160 = vadd.f32 %v1053, %v1115
      %v1161 = vadd.f32 %v1054, %v1154
      %s1162 = scalar_lea.vmem %s1, 16
      %v1163 = vld [vmem:[%s1162] sm:$0x3]
      %1164 = vrot.lane.b32.xlu0 %v320, 90
      %v1165 = vpop.permute.xlu0 %1164
      %1166 = vrot.lane.b32.xlu0 %v321, 90
      %v1167 = vpop.permute.xlu0 %1166
      %1168 = vrot.lane.b32.xlu0 %v322, 90
      %v1169 = vpop.permute.xlu0 %1168
      %vm1170 = vcmask 736256
      %v1171 = vsel %vm1170, %v1165, %v1167
      %v1172 = vsel %vm1170, %v1167, %v1169
      %v1174 = vsel %vm332, %v1163, 0
      %v1177 = vsel %vm336, %v1171, 0
      %v1180 = vsel %vm336, %v1172, 0
      %v1183 = vsel %vm336, %v1169, 0
      %1185 = vmatprep.subr.bf16.mxu0 %v1180
      %1186 = vmatpush1.bf16.msra.mxu0 %v1177
      %1187 = vmatprep.subr.bf16.mxu0 0
      %1188 = vmatpush1.bf16.msra.mxu0 0
      %1189 = vmatprep.subr.bf16.mxu0 0
      %1190 = vmatpush1.bf16.msra.mxu0 0
      %1191 = vmatprep.subr.bf16.mxu0 0
      %1192 = vmatpush1.bf16.msra.mxu0 0
      %1193 = vmatprep.subr.bf16.mxu0 0
      %1194 = vmatpush1.bf16.msra.mxu0 0
      %1195 = vmatprep.subr.bf16.mxu0 0
      %1196 = vmatpush1.bf16.msra.mxu0 0
      %1197 = vmatprep.subr.bf16.mxu0 0
      %1198 = vmatpush1.bf16.msra.mxu0 0
      %1199 = vmatprep.subr.bf16.mxu0 0
      %1200 = vmatpush1.bf16.msra.mxu0 0
      %1201 = vmatprep.subr.bf16.mxu0 0
      %1202 = vmatpush1.bf16.msra.mxu0 0
      %1203 = vmatprep.subr.bf16.mxu0 0
      %1204 = vmatpush1.bf16.msra.mxu0 0
      %1205 = vmatprep.subr.bf16.mxu0 0
      %1206 = vmatpush1.bf16.msra.mxu0 0
      %1207 = vmatprep.subr.bf16.mxu0 0
      %1208 = vmatpush1.bf16.msra.mxu0 0
      %1209 = vmatprep.subr.bf16.mxu0 0
      %1210 = vmatpush1.bf16.msra.mxu0 0
      %1211 = vmatprep.subr.bf16.mxu0 0
      %1212 = vmatpush1.bf16.msra.mxu0 0
      %1213 = vmatprep.subr.bf16.mxu0 0
      %1214 = vmatpush1.bf16.msra.mxu0 0
      %1215 = vmatprep.subr.bf16.mxu0 0
      %1216 = vmatpush1.bf16.msra.mxu0 0
      %1217 = vmatprep.mubr.bf16.mxu0 0
      %1218 = vmatmul.mubr.bf16.gmra.mrb[0].mxu0 %v1174
      %v1219 = vpop.f32.mrb[0].mxu0
      %v1220 = vadd.f32 0.0, %v1219
      %v1221 = vpop.f32.mrb[0].mxu0
      %v1222 = vadd.f32 0.0, %v1221
      %v1223 = vpop.f32.mrb[0].mxu0
      %v1224 = vpop.f32.mrb[0].mxu0
      %1225 = vdwg.mxu0
      %1226 = vmatprep.subr.bf16.mxu0 0
      %1227 = vmatpush1.bf16.msra.mxu0 %v1183
      %1228 = vmatprep.subr.bf16.mxu0 0
      %1229 = vmatpush1.bf16.msra.mxu0 0
      %1230 = vmatprep.subr.bf16.mxu0 0
      %1231 = vmatpush1.bf16.msra.mxu0 0
      %1232 = vmatprep.subr.bf16.mxu0 0
      %1233 = vmatpush1.bf16.msra.mxu0 0
      %1234 = vmatprep.subr.bf16.mxu0 0
      %1235 = vmatpush1.bf16.msra.mxu0 0
      %1236 = vmatprep.subr.bf16.mxu0 0
      %1237 = vmatpush1.bf16.msra.mxu0 0
      %1238 = vmatprep.subr.bf16.mxu0 0
      %1239 = vmatpush1.bf16.msra.mxu0 0
      %1240 = vmatprep.subr.bf16.mxu0 0
      %1241 = vmatpush1.bf16.msra.mxu0 0
      %1242 = vmatprep.subr.bf16.mxu0 0
      %1243 = vmatpush1.bf16.msra.mxu0 0
      %1244 = vmatprep.subr.bf16.mxu0 0
      %1245 = vmatpush1.bf16.msra.mxu0 0
      %1246 = vmatprep.subr.bf16.mxu0 0
      %1247 = vmatpush1.bf16.msra.mxu0 0
      %1248 = vmatprep.subr.bf16.mxu0 0
      %1249 = vmatpush1.bf16.msra.mxu0 0
      %1250 = vmatprep.subr.bf16.mxu0 0
      %1251 = vmatpush1.bf16.msra.mxu0 0
      %1252 = vmatprep.subr.bf16.mxu0 0
      %1253 = vmatpush1.bf16.msra.mxu0 0
      %1254 = vmatprep.subr.bf16.mxu0 0
      %1255 = vmatpush1.bf16.msra.mxu0 0
      %1256 = vmatprep.subr.bf16.mxu0 0
      %1257 = vmatpush1.bf16.msra.mxu0 0
      %1258 = vmatprep.mubr.bf16.mxu0 0
      %1259 = vmatmul.mubr.bf16.gmra.mrb[0].mxu0 %v1174
      %v1260 = vpop.f32.mrb[0].mxu0
      %v1261 = vadd.f32 0.0, %v1260
      %v1262 = vpop.f32.mrb[0].mxu0
      %v1263 = vpop.f32.mrb[0].mxu0
      %v1264 = vpop.f32.mrb[0].mxu0
      %1265 = vdwg.mxu0
      %v1266 = vadd.f32 %v1159, %v1220
      %v1267 = vadd.f32 %v1160, %v1222
      %v1268 = vadd.f32 %v1161, %v1261
      %1270 = vset.pattern.permute.xlu0 0
      %1271 = vperm.xlu0 %1270, %v310
      %v1272 = vpop.permute.xlu0 %1271
      %v1274 = vmul.f32 %v1266, %v1272
      %v1275 = vmul.f32 %v1267, %v1272
      %v1276 = vmul.f32 %v1268, %v1272
      %1278 = vset.pattern.permute.xlu0 0
      %1279 = vperm.xlu0 %1278, %v311
      %v1280 = vpop.permute.xlu0 %1279
      %v1282 = vadd.f32 %v1274, %v1280
      %v1283 = vadd.f32 %v1275, %v1280
      %v1284 = vadd.f32 %v1276, %v1280
      %v1285 = vmax.f32 %v1282, 0.0
      %v1286 = vmax.f32 %v1283, 0.0
      %v1287 = vmax.f32 %v1284, 0.0
      %v1289 = vlaneseq
      %v1290 = vshrl.u32 %v1289, 7
      %v1291 = vsub.s32 0, %v1290
      %v1292 = vrot.slane %v307, %v1291
      %v1293 = vlaneseq
      %v1294 = vshrl.u32 %v1293, 7
      %v1295 = vsub.s32 1, %v1294
      %v1296 = vrot.slane %v307, %v1295
      %v1297 = vlaneseq
      %v1298 = vshrl.u32 %v1297, 7
      %v1299 = vsub.s32 2, %v1298
      %v1300 = vrot.slane %v307, %v1299
      %v1304 = vmul.f32 %v1285, %v1292
      %v1305 = vmul.f32 %v1286, %v1296
      %v1306 = vmul.f32 %v1287, %v1300
      %vm1307 = vcmask 1041408
      %vm1308 = vcmask 1043458
      %vm1309 = vmor %vm1308, %vm1307
      %vm1310 = vcmask 570372
      %vm1311 = vmor %vm1310, %vm1309
      %1312 = vst.msk [vmem:[#allocation2] sm:$0x3f] %vm1311, 0
      %v1313 = vpack.c.bf16 %v1304, %v1304
      %v1314 = vpack.c.bf16 %v1305, %v1305
      %v1315 = vpack.c.bf16 %v1306, %v1306
      %v1319 = vcombine.low %v1313, %v1314
      %v1321 = vunpack.c.l.s4 1983009808
      %v1322 = vunpack.c.0.s8 %v1321
      %v1323 = vlaneseq
      %v1324 = vshrl.u32 %v1323, 7
      %v1325 = vsub.s32 %v1322, %v1324
      %v1326 = vrot.slane %v1319, %v1325
      %v1328 = vunpack.c.l.s4 1983009808
      %v1329 = vunpack.c.0.s8 %v1328
      %v1330 = vlaneseq
      %v1331 = vshrl.u32 %v1330, 7
      %v1332 = vsub.s32 %v1329, %v1331
      %v1333 = vrot.slane %v1315, %v1332
      %v1334 = vcombine.low %v1326, %v1333
      %1335 = vrot.lane.b32.xlu0 %v1334, 19
      %v1336 = vpop.permute.xlu0 %1335
      %v1337 = vrot.slane %v1336, 6
      %vm1338 = vcmask 154624
      %v1339 = vsel %vm1338, %v1337, %v1336
      %vm1341 = vcmask 1041560
      %vm1342 = vmor %vm1308, %vm1341
      %vm1343 = vcmask 414724
      %vm1344 = vmor %vm1343, %vm1342
      %1345 = vst.msk [vmem:[#allocation2] sm:$0x3f] %vm1344, %v1339
      %v1346 = vld [vmem:[#allocation2] sm:$0x3f]
      %v1347 = vld [vmem:[%s5] sm:$0xff]
      %v1348 = vld [vmem:[%s6] sm:$0xff]
      %v1349 = vld [vmem:[%s4] sm:$0xf]
      %s1350 = scalar_lea.vmem %s4, 4
      %v1351 = vld [vmem:[%s1350] sm:$0xf]
      %v1353 = vcombine.high %v1346, %v1346
      %v1355 = vunpack.c.l.s4 1983009808
      %v1356 = vunpack.c.0.s8 %v1355
      %v1357 = vlaneseq
      %v1358 = vshrl.u32 %v1357, 7
      %v1359 = vsub.s32 %v1356, %v1358
      %v1360 = vrot.slane %v1346, %v1359
      %v1362 = vunpack.c.l.s4 1983009808
      %v1363 = vunpack.c.0.s8 %v1362
      %v1364 = vlaneseq
      %v1365 = vshrl.u32 %v1364, 7
      %v1366 = vsub.s32 %v1363, %v1365
      %v1367 = vrot.slane %v1353, %v1366
      %v1368 = vcombine.high %v1360, %v1360
      %1369 = vrot.lane.b32.xlu0 %v1360, 127
      %v1370 = vpop.permute.xlu0 %1369
      %1371 = vrot.lane.b32.xlu0 %v1368, 127
      %v1372 = vpop.permute.xlu0 %1371
      %1373 = vrot.lane.b32.xlu0 %v1367, 127
      %v1374 = vpop.permute.xlu0 %1373
      %v1375 = vsel %vm329, %v1370, %v1372
      %v1376 = vsel %vm329, %v1372, %v1374
      %vm1377 = vcmask 31744
      %v1379 = vsel %vm1377, %v1351, 0
      %v1382 = vsel %vm1307, %v1375, 0
      %v1385 = vsel %vm1307, %v1376, 0
      %v1388 = vsel %vm1307, %v1374, 0
      %1390 = vmatprep.subr.bf16.mxu0 %v1385
      %1391 = vmatpush1.bf16.msra.mxu0 %v1382
      %1392 = vmatprep.subr.bf16.mxu0 0
      %1393 = vmatpush1.bf16.msra.mxu0 0
      %1394 = vmatprep.subr.bf16.mxu0 0
      %1395 = vmatpush1.bf16.msra.mxu0 0
      %1396 = vmatprep.subr.bf16.mxu0 0
      %1397 = vmatpush1.bf16.msra.mxu0 0
      %1398 = vmatprep.subr.bf16.mxu0 0
      %1399 = vmatpush1.bf16.msra.mxu0 0
      %1400 = vmatprep.subr.bf16.mxu0 0
      %1401 = vmatpush1.bf16.msra.mxu0 0
      %1402 = vmatprep.subr.bf16.mxu0 0
      %1403 = vmatpush1.bf16.msra.mxu0 0
      %1404 = vmatprep.subr.bf16.mxu0 0
      %1405 = vmatpush1.bf16.msra.mxu0 0
      %1406 = vmatprep.subr.bf16.mxu0 0
      %1407 = vmatpush1.bf16.msra.mxu0 0
      %1408 = vmatprep.subr.bf16.mxu0 0
      %1409 = vmatpush1.bf16.msra.mxu0 0
      %1410 = vmatprep.subr.bf16.mxu0 0
      %1411 = vmatpush1.bf16.msra.mxu0 0
      %1412 = vmatprep.subr.bf16.mxu0 0
      %1413 = vmatpush1.bf16.msra.mxu0 0
      %1414 = vmatprep.subr.bf16.mxu0 0
      %1415 = vmatpush1.bf16.msra.mxu0 0
      %1416 = vmatprep.subr.bf16.mxu0 0
      %1417 = vmatpush1.bf16.msra.mxu0 0
      %1418 = vmatprep.subr.bf16.mxu0 0
      %1419 = vmatpush1.bf16.msra.mxu0 0
      %1420 = vmatprep.subr.bf16.mxu0 0
      %1421 = vmatpush1.bf16.msra.mxu0 0
      %1422 = vmatprep.mubr.bf16.mxu0 0
      %1423 = vmatmul.mubr.bf16.gmra.mrb[0].mxu0 %v1379
      %v1424 = vpop.f32.mrb[0].mxu0
      %v1425 = vadd.f32 0.0, %v1424
      %v1426 = vpop.f32.mrb[0].mxu0
      %v1427 = vadd.f32 0.0, %v1426
      %v1428 = vpop.f32.mrb[0].mxu0
      %v1429 = vpop.f32.mrb[0].mxu0
      %1430 = vdwg.mxu0
      %1431 = vmatprep.subr.bf16.mxu0 0
      %1432 = vmatpush1.bf16.msra.mxu0 %v1388
      %1433 = vmatprep.subr.bf16.mxu0 0
      %1434 = vmatpush1.bf16.msra.mxu0 0
      %1435 = vmatprep.subr.bf16.mxu0 0
      %1436 = vmatpush1.bf16.msra.mxu0 0
      %1437 = vmatprep.subr.bf16.mxu0 0
      %1438 = vmatpush1.bf16.msra.mxu0 0
      %1439 = vmatprep.subr.bf16.mxu0 0
      %1440 = vmatpush1.bf16.msra.mxu0 0
      %1441 = vmatprep.subr.bf16.mxu0 0
      %1442 = vmatpush1.bf16.msra.mxu0 0
      %1443 = vmatprep.subr.bf16.mxu0 0
      %1444 = vmatpush1.bf16.msra.mxu0 0
      %1445 = vmatprep.subr.bf16.mxu0 0
      %1446 = vmatpush1.bf16.msra.mxu0 0
      %1447 = vmatprep.subr.bf16.mxu0 0
      %1448 = vmatpush1.bf16.msra.mxu0 0
      %1449 = vmatprep.subr.bf16.mxu0 0
      %1450 = vmatpush1.bf16.msra.mxu0 0
      %1451 = vmatprep.subr.bf16.mxu0 0
      %1452 = vmatpush1.bf16.msra.mxu0 0
      %1453 = vmatprep.subr.bf16.mxu0 0
      %1454 = vmatpush1.bf16.msra.mxu0 0
      %1455 = vmatprep.subr.bf16.mxu0 0
      %1456 = vmatpush1.bf16.msra.mxu0 0
      %1457 = vmatprep.subr.bf16.mxu0 0
      %1458 = vmatpush1.bf16.msra.mxu0 0
      %1459 = vmatprep.subr.bf16.mxu0 0
      %1460 = vmatpush1.bf16.msra.mxu0 0
      %1461 = vmatprep.subr.bf16.mxu0 0
      %1462 = vmatpush1.bf16.msra.mxu0 0
      %1463 = vmatprep.mubr.bf16.mxu0 0
      %1464 = vmatmul.mubr.bf16.gmra.mrb[0].mxu0 %v1379
      %v1465 = vpop.f32.mrb[0].mxu0
      %v1466 = vadd.f32 0.0, %v1465
      %v1467 = vpop.f32.mrb[0].mxu0
      %v1468 = vpop.f32.mrb[0].mxu0
      %v1469 = vpop.f32.mrb[0].mxu0
      %1470 = vdwg.mxu0
      %v1472 = vsel %vm1377, %v1349, 0
      %v1475 = vsel %vm1307, %v1360, 0
      %v1478 = vsel %vm1307, %v1368, 0
      %v1481 = vsel %vm1307, %v1367, 0
      %1483 = vmatprep.subr.bf16.mxu0 %v1478
      %1484 = vmatpush1.bf16.msra.mxu0 %v1475
      %1485 = vmatprep.subr.bf16.mxu0 0
      %1486 = vmatpush1.bf16.msra.mxu0 0
      %1487 = vmatprep.subr.bf16.mxu0 0
      %1488 = vmatpush1.bf16.msra.mxu0 0
      %1489 = vmatprep.subr.bf16.mxu0 0
      %1490 = vmatpush1.bf16.msra.mxu0 0
      %1491 = vmatprep.subr.bf16.mxu0 0
      %1492 = vmatpush1.bf16.msra.mxu0 0
      %1493 = vmatprep.subr.bf16.mxu0 0
      %1494 = vmatpush1.bf16.msra.mxu0 0
      %1495 = vmatprep.subr.bf16.mxu0 0
      %1496 = vmatpush1.bf16.msra.mxu0 0
      %1497 = vmatprep.subr.bf16.mxu0 0
      %1498 = vmatpush1.bf16.msra.mxu0 0
      %1499 = vmatprep.subr.bf16.mxu0 0
      %1500 = vmatpush1.bf16.msra.mxu0 0
      %1501 = vmatprep.subr.bf16.mxu0 0
      %1502 = vmatpush1.bf16.msra.mxu0 0
      %1503 = vmatprep.subr.bf16.mxu0 0
      %1504 = vmatpush1.bf16.msra.mxu0 0
      %1505 = vmatprep.subr.bf16.mxu0 0
      %1506 = vmatpush1.bf16.msra.mxu0 0
      %1507 = vmatprep.subr.bf16.mxu0 0
      %1508 = vmatpush1.bf16.msra.mxu0 0
      %1509 = vmatprep.subr.bf16.mxu0 0
      %1510 = vmatpush1.bf16.msra.mxu0 0
      %1511 = vmatprep.subr.bf16.mxu0 0
      %1512 = vmatpush1.bf16.msra.mxu0 0
      %1513 = vmatprep.subr.bf16.mxu0 0
      %1514 = vmatpush1.bf16.msra.mxu0 0
      %1515 = vmatprep.mubr.bf16.mxu0 0
      %1516 = vmatmul.mubr.bf16.gmra.mrb[0].mxu0 %v1472
      %v1517 = vpop.f32.mrb[0].mxu0
      %v1518 = vadd.f32 %v1425, %v1517
      %v1519 = vpop.f32.mrb[0].mxu0
      %v1520 = vadd.f32 %v1427, %v1519
      %v1521 = vpop.f32.mrb[0].mxu0
      %v1522 = vpop.f32.mrb[0].mxu0
      %1523 = vdwg.mxu0
      %1524 = vmatprep.subr.bf16.mxu0 0
      %1525 = vmatpush1.bf16.msra.mxu0 %v1481
      %1526 = vmatprep.subr.bf16.mxu0 0
      %1527 = vmatpush1.bf16.msra.mxu0 0
      %1528 = vmatprep.subr.bf16.mxu0 0
      %1529 = vmatpush1.bf16.msra.mxu0 0
      %1530 = vmatprep.subr.bf16.mxu0 0
      %1531 = vmatpush1.bf16.msra.mxu0 0
      %1532 = vmatprep.subr.bf16.mxu0 0
      %1533 = vmatpush1.bf16.msra.mxu0 0
      %1534 = vmatprep.subr.bf16.mxu0 0
      %1535 = vmatpush1.bf16.msra.mxu0 0
      %1536 = vmatprep.subr.bf16.mxu0 0
      %1537 = vmatpush1.bf16.msra.mxu0 0
      %1538 = vmatprep.subr.bf16.mxu0 0
      %1539 = vmatpush1.bf16.msra.mxu0 0
      %1540 = vmatprep.subr.bf16.mxu0 0
      %1541 = vmatpush1.bf16.msra.mxu0 0
      %1542 = vmatprep.subr.bf16.mxu0 0
      %1543 = vmatpush1.bf16.msra.mxu0 0
      %1544 = vmatprep.subr.bf16.mxu0 0
      %1545 = vmatpush1.bf16.msra.mxu0 0
      %1546 = vmatprep.subr.bf16.mxu0 0
      %1547 = vmatpush1.bf16.msra.mxu0 0
      %1548 = vmatprep.subr.bf16.mxu0 0
      %1549 = vmatpush1.bf16.msra.mxu0 0
      %1550 = vmatprep.subr.bf16.mxu0 0
      %1551 = vmatpush1.bf16.msra.mxu0 0
      %1552 = vmatprep.subr.bf16.mxu0 0
      %1553 = vmatpush1.bf16.msra.mxu0 0
      %1554 = vmatprep.subr.bf16.mxu0 0
      %1555 = vmatpush1.bf16.msra.mxu0 0
      %1556 = vmatprep.mubr.bf16.mxu0 0
      %1557 = vmatmul.mubr.bf16.gmra.mrb[0].mxu0 %v1472
      %v1558 = vpop.f32.mrb[0].mxu0
      %v1559 = vadd.f32 %v1466, %v1558
      %v1560 = vpop.f32.mrb[0].mxu0
      %v1561 = vpop.f32.mrb[0].mxu0
      %v1562 = vpop.f32.mrb[0].mxu0
      %1563 = vdwg.mxu0
      %s1564 = scalar_lea.vmem %s4, 8
      %v1565 = vld [vmem:[%s1564] sm:$0xf]
      %1566 = vrot.lane.b32.xlu0 %v1360, 126
      %v1567 = vpop.permute.xlu0 %1566
      %1568 = vrot.lane.b32.xlu0 %v1368, 126
      %v1569 = vpop.permute.xlu0 %1568
      %1570 = vrot.lane.b32.xlu0 %v1367, 126
      %v1571 = vpop.permute.xlu0 %1570
      %v1572 = vsel %vm528, %v1567, %v1569
      %v1573 = vsel %vm528, %v1569, %v1571
      %v1575 = vsel %vm1377, %v1565, 0
      %v1578 = vsel %vm1307, %v1572, 0
      %v1581 = vsel %vm1307, %v1573, 0
      %v1584 = vsel %vm1307, %v1571, 0
      %1586 = vmatprep.subr.bf16.mxu0 %v1581
      %1587 = vmatpush1.bf16.msra.mxu0 %v1578
      %1588 = vmatprep.subr.bf16.mxu0 0
      %1589 = vmatpush1.bf16.msra.mxu0 0
      %1590 = vmatprep.subr.bf16.mxu0 0
      %1591 = vmatpush1.bf16.msra.mxu0 0
      %1592 = vmatprep.subr.bf16.mxu0 0
      %1593 = vmatpush1.bf16.msra.mxu0 0
      %1594 = vmatprep.subr.bf16.mxu0 0
      %1595 = vmatpush1.bf16.msra.mxu0 0
      %1596 = vmatprep.subr.bf16.mxu0 0
      %1597 = vmatpush1.bf16.msra.mxu0 0
      %1598 = vmatprep.subr.bf16.mxu0 0
      %1599 = vmatpush1.bf16.msra.mxu0 0
      %1600 = vmatprep.subr.bf16.mxu0 0
      %1601 = vmatpush1.bf16.msra.mxu0 0
      %1602 = vmatprep.subr.bf16.mxu0 0
      %1603 = vmatpush1.bf16.msra.mxu0 0
      %1604 = vmatprep.subr.bf16.mxu0 0
      %1605 = vmatpush1.bf16.msra.mxu0 0
      %1606 = vmatprep.subr.bf16.mxu0 0
      %1607 = vmatpush1.bf16.msra.mxu0 0
      %1608 = vmatprep.subr.bf16.mxu0 0
      %1609 = vmatpush1.bf16.msra.mxu0 0
      %1610 = vmatprep.subr.bf16.mxu0 0
      %1611 = vmatpush1.bf16.msra.mxu0 0
      %1612 = vmatprep.subr.bf16.mxu0 0
      %1613 = vmatpush1.bf16.msra.mxu0 0
      %1614 = vmatprep.subr.bf16.mxu0 0
      %1615 = vmatpush1.bf16.msra.mxu0 0
      %1616 = vmatprep.subr.bf16.mxu0 0
      %1617 = vmatpush1.bf16.msra.mxu0 0
      %1618 = vmatprep.mubr.bf16.mxu0 0
      %1619 = vmatmul.mubr.bf16.gmra.mrb[0].mxu0 %v1575
      %v1620 = vpop.f32.mrb[0].mxu0
      %v1621 = vadd.f32 0.0, %v1620
      %v1622 = vpop.f32.mrb[0].mxu0
      %v1623 = vadd.f32 0.0, %v1622
      %v1624 = vpop.f32.mrb[0].mxu0
      %v1625 = vpop.f32.mrb[0].mxu0
      %1626 = vdwg.mxu0
      %1627 = vmatprep.subr.bf16.mxu0 0
      %1628 = vmatpush1.bf16.msra.mxu0 %v1584
      %1629 = vmatprep.subr.bf16.mxu0 0
      %1630 = vmatpush1.bf16.msra.mxu0 0
      %1631 = vmatprep.subr.bf16.mxu0 0
      %1632 = vmatpush1.bf16.msra.mxu0 0
      %1633 = vmatprep.subr.bf16.mxu0 0
      %1634 = vmatpush1.bf16.msra.mxu0 0
      %1635 = vmatprep.subr.bf16.mxu0 0
      %1636 = vmatpush1.bf16.msra.mxu0 0
      %1637 = vmatprep.subr.bf16.mxu0 0
      %1638 = vmatpush1.bf16.msra.mxu0 0
      %1639 = vmatprep.subr.bf16.mxu0 0
      %1640 = vmatpush1.bf16.msra.mxu0 0
      %1641 = vmatprep.subr.bf16.mxu0 0
      %1642 = vmatpush1.bf16.msra.mxu0 0
      %1643 = vmatprep.subr.bf16.mxu0 0
      %1644 = vmatpush1.bf16.msra.mxu0 0
      %1645 = vmatprep.subr.bf16.mxu0 0
      %1646 = vmatpush1.bf16.msra.mxu0 0
      %1647 = vmatprep.subr.bf16.mxu0 0
      %1648 = vmatpush1.bf16.msra.mxu0 0
      %1649 = vmatprep.subr.bf16.mxu0 0
      %1650 = vmatpush1.bf16.msra.mxu0 0
      %1651 = vmatprep.subr.bf16.mxu0 0
      %1652 = vmatpush1.bf16.msra.mxu0 0
      %1653 = vmatprep.subr.bf16.mxu0 0
      %1654 = vmatpush1.bf16.msra.mxu0 0
      %1655 = vmatprep.subr.bf16.mxu0 0
      %1656 = vmatpush1.bf16.msra.mxu0 0
      %1657 = vmatprep.subr.bf16.mxu0 0
      %1658 = vmatpush1.bf16.msra.mxu0 0
      %1659 = vmatprep.mubr.bf16.mxu0 0
      %1660 = vmatmul.mubr.bf16.gmra.mrb[0].mxu0 %v1575
      %v1661 = vpop.f32.mrb[0].mxu0
      %v1662 = vadd.f32 0.0, %v1661
      %v1663 = vpop.f32.mrb[0].mxu0
      %v1664 = vpop.f32.mrb[0].mxu0
      %v1665 = vpop.f32.mrb[0].mxu0
      %1666 = vdwg.mxu0
      %v1667 = vadd.f32 %v1518, %v1621
      %v1668 = vadd.f32 %v1520, %v1623
      %v1669 = vadd.f32 %v1559, %v1662
      %s1670 = scalar_lea.vmem %s4, 12
      %v1671 = vld [vmem:[%s1670] sm:$0xf]
      %1672 = vrot.lane.b32.xlu0 %v1360, 110
      %v1673 = vpop.permute.xlu0 %1672
      %1674 = vrot.lane.b32.xlu0 %v1368, 110
      %v1675 = vpop.permute.xlu0 %1674
      %1676 = vrot.lane.b32.xlu0 %v1367, 110
      %v1677 = vpop.permute.xlu0 %1676
      %v1678 = vsel %vm635, %v1673, %v1675
      %v1679 = vsel %vm635, %v1675, %v1677
      %v1681 = vsel %vm1377, %v1671, 0
      %v1684 = vsel %vm1307, %v1678, 0
      %v1687 = vsel %vm1307, %v1679, 0
      %v1690 = vsel %vm1307, %v1677, 0
      %1692 = vmatprep.subr.bf16.mxu0 %v1687
      %1693 = vmatpush1.bf16.msra.mxu0 %v1684
      %1694 = vmatprep.subr.bf16.mxu0 0
      %1695 = vmatpush1.bf16.msra.mxu0 0
      %1696 = vmatprep.subr.bf16.mxu0 0
      %1697 = vmatpush1.bf16.msra.mxu0 0
      %1698 = vmatprep.subr.bf16.mxu0 0
      %1699 = vmatpush1.bf16.msra.mxu0 0
      %1700 = vmatprep.subr.bf16.mxu0 0
      %1701 = vmatpush1.bf16.msra.mxu0 0
      %1702 = vmatprep.subr.bf16.mxu0 0
      %1703 = vmatpush1.bf16.msra.mxu0 0
      %1704 = vmatprep.subr.bf16.mxu0 0
      %1705 = vmatpush1.bf16.msra.mxu0 0
      %1706 = vmatprep.subr.bf16.mxu0 0
      %1707 = vmatpush1.bf16.msra.mxu0 0
      %1708 = vmatprep.subr.bf16.mxu0 0
      %1709 = vmatpush1.bf16.msra.mxu0 0
      %1710 = vmatprep.subr.bf16.mxu0 0
      %1711 = vmatpush1.bf16.msra.mxu0 0
      %1712 = vmatprep.subr.bf16.mxu0 0
      %1713 = vmatpush1.bf16.msra.mxu0 0
      %1714 = vmatprep.subr.bf16.mxu0 0
      %1715 = vmatpush1.bf16.msra.mxu0 0
      %1716 = vmatprep.subr.bf16.mxu0 0
      %1717 = vmatpush1.bf16.msra.mxu0 0
      %1718 = vmatprep.subr.bf16.mxu0 0
      %1719 = vmatpush1.bf16.msra.mxu0 0
      %1720 = vmatprep.subr.bf16.mxu0 0
      %1721 = vmatpush1.bf16.msra.mxu0 0
      %1722 = vmatprep.subr.bf16.mxu0 0
      %1723 = vmatpush1.bf16.msra.mxu0 0
      %1724 = vmatprep.mubr.bf16.mxu0 0
      %1725 = vmatmul.mubr.bf16.gmra.mrb[0].mxu0 %v1681
      %v1726 = vpop.f32.mrb[0].mxu0
      %v1727 = vadd.f32 0.0, %v1726
      %v1728 = vpop.f32.mrb[0].mxu0
      %v1729 = vadd.f32 0.0, %v1728
      %v1730 = vpop.f32.mrb[0].mxu0
      %v1731 = vpop.f32.mrb[0].mxu0
      %1732 = vdwg.mxu0
      %1733 = vmatprep.subr.bf16.mxu0 0
      %1734 = vmatpush1.bf16.msra.mxu0 %v1690
      %1735 = vmatprep.subr.bf16.mxu0 0
      %1736 = vmatpush1.bf16.msra.mxu0 0
      %1737 = vmatprep.subr.bf16.mxu0 0
      %1738 = vmatpush1.bf16.msra.mxu0 0
      %1739 = vmatprep.subr.bf16.mxu0 0
      %1740 = vmatpush1.bf16.msra.mxu0 0
      %1741 = vmatprep.subr.bf16.mxu0 0
      %1742 = vmatpush1.bf16.msra.mxu0 0
      %1743 = vmatprep.subr.bf16.mxu0 0
      %1744 = vmatpush1.bf16.msra.mxu0 0
      %1745 = vmatprep.subr.bf16.mxu0 0
      %1746 = vmatpush1.bf16.msra.mxu0 0
      %1747 = vmatprep.subr.bf16.mxu0 0
      %1748 = vmatpush1.bf16.msra.mxu0 0
      %1749 = vmatprep.subr.bf16.mxu0 0
      %1750 = vmatpush1.bf16.msra.mxu0 0
      %1751 = vmatprep.subr.bf16.mxu0 0
      %1752 = vmatpush1.bf16.msra.mxu0 0
      %1753 = vmatprep.subr.bf16.mxu0 0
      %1754 = vmatpush1.bf16.msra.mxu0 0
      %1755 = vmatprep.subr.bf16.mxu0 0
      %1756 = vmatpush1.bf16.msra.mxu0 0
      %1757 = vmatprep.subr.bf16.mxu0 0
      %1758 = vmatpush1.bf16.msra.mxu0 0
      %1759 = vmatprep.subr.bf16.mxu0 0
      %1760 = vmatpush1.bf16.msra.mxu0 0
      %1761 = vmatprep.subr.bf16.mxu0 0
      %1762 = vmatpush1.bf16.msra.mxu0 0
      %1763 = vmatprep.subr.bf16.mxu0 0
      %1764 = vmatpush1.bf16.msra.mxu0 0
      %1765 = vmatprep.mubr.bf16.mxu0 0
      %1766 = vmatmul.mubr.bf16.gmra.mrb[0].mxu0 %v1681
      %v1767 = vpop.f32.mrb[0].mxu0
      %v1768 = vadd.f32 0.0, %v1767
      %v1769 = vpop.f32.mrb[0].mxu0
      %v1770 = vpop.f32.mrb[0].mxu0
      %v1771 = vpop.f32.mrb[0].mxu0
      %1772 = vdwg.mxu0
      %v1773 = vadd.f32 %v1667, %v1727
      %v1774 = vadd.f32 %v1668, %v1729
      %v1775 = vadd.f32 %v1669, %v1768
      %s1776 = scalar_lea.vmem %s4, 16
      %v1777 = vld [vmem:[%s1776] sm:$0xf]
      %1778 = vrot.lane.b32.xlu0 %v1360, 109
      %v1779 = vpop.permute.xlu0 %1778
      %1780 = vrot.lane.b32.xlu0 %v1368, 109
      %v1781 = vpop.permute.xlu0 %1780
      %1782 = vrot.lane.b32.xlu0 %v1367, 109
      %v1783 = vpop.permute.xlu0 %1782
      %v1784 = vsel %vm742, %v1779, %v1781
      %v1785 = vsel %vm742, %v1781, %v1783
      %v1787 = vsel %vm1377, %v1777, 0
      %v1790 = vsel %vm1307, %v1784, 0
      %v1793 = vsel %vm1307, %v1785, 0
      %v1796 = vsel %vm1307, %v1783, 0
      %1798 = vmatprep.subr.bf16.mxu0 %v1793
      %1799 = vmatpush1.bf16.msra.mxu0 %v1790
      %1800 = vmatprep.subr.bf16.mxu0 0
      %1801 = vmatpush1.bf16.msra.mxu0 0
      %1802 = vmatprep.subr.bf16.mxu0 0
      %1803 = vmatpush1.bf16.msra.mxu0 0
      %1804 = vmatprep.subr.bf16.mxu0 0
      %1805 = vmatpush1.bf16.msra.mxu0 0
      %1806 = vmatprep.subr.bf16.mxu0 0
      %1807 = vmatpush1.bf16.msra.mxu0 0
      %1808 = vmatprep.subr.bf16.mxu0 0
      %1809 = vmatpush1.bf16.msra.mxu0 0
      %1810 = vmatprep.subr.bf16.mxu0 0
      %1811 = vmatpush1.bf16.msra.mxu0 0
      %1812 = vmatprep.subr.bf16.mxu0 0
      %1813 = vmatpush1.bf16.msra.mxu0 0
      %1814 = vmatprep.subr.bf16.mxu0 0
      %1815 = vmatpush1.bf16.msra.mxu0 0
      %1816 = vmatprep.subr.bf16.mxu0 0
      %1817 = vmatpush1.bf16.msra.mxu0 0
      %1818 = vmatprep.subr.bf16.mxu0 0
      %1819 = vmatpush1.bf16.msra.mxu0 0
      %1820 = vmatprep.subr.bf16.mxu0 0
      %1821 = vmatpush1.bf16.msra.mxu0 0
      %1822 = vmatprep.subr.bf16.mxu0 0
      %1823 = vmatpush1.bf16.msra.mxu0 0
      %1824 = vmatprep.subr.bf16.mxu0 0
      %1825 = vmatpush1.bf16.msra.mxu0 0
      %1826 = vmatprep.subr.bf16.mxu0 0
      %1827 = vmatpush1.bf16.msra.mxu0 0
      %1828 = vmatprep.subr.bf16.mxu0 0
      %1829 = vmatpush1.bf16.msra.mxu0 0
      %1830 = vmatprep.mubr.bf16.mxu0 0
      %1831 = vmatmul.mubr.bf16.gmra.mrb[0].mxu0 %v1787
      %v1832 = vpop.f32.mrb[0].mxu0
      %v1833 = vadd.f32 0.0, %v1832
      %v1834 = vpop.f32.mrb[0].mxu0
      %v1835 = vadd.f32 0.0, %v1834
      %v1836 = vpop.f32.mrb[0].mxu0
      %v1837 = vpop.f32.mrb[0].mxu0
      %1838 = vdwg.mxu0
      %1839 = vmatprep.subr.bf16.mxu0 0
      %1840 = vmatpush1.bf16.msra.mxu0 %v1796
      %1841 = vmatprep.subr.bf16.mxu0 0
      %1842 = vmatpush1.bf16.msra.mxu0 0
      %1843 = vmatprep.subr.bf16.mxu0 0
      %1844 = vmatpush1.bf16.msra.mxu0 0
      %1845 = vmatprep.subr.bf16.mxu0 0
      %1846 = vmatpush1.bf16.msra.mxu0 0
      %1847 = vmatprep.subr.bf16.mxu0 0
      %1848 = vmatpush1.bf16.msra.mxu0 0
      %1849 = vmatprep.subr.bf16.mxu0 0
      %1850 = vmatpush1.bf16.msra.mxu0 0
      %1851 = vmatprep.subr.bf16.mxu0 0
      %1852 = vmatpush1.bf16.msra.mxu0 0
      %1853 = vmatprep.subr.bf16.mxu0 0
      %1854 = vmatpush1.bf16.msra.mxu0 0
      %1855 = vmatprep.subr.bf16.mxu0 0
      %1856 = vmatpush1.bf16.msra.mxu0 0
      %1857 = vmatprep.subr.bf16.mxu0 0
      %1858 = vmatpush1.bf16.msra.mxu0 0
      %1859 = vmatprep.subr.bf16.mxu0 0
      %1860 = vmatpush1.bf16.msra.mxu0 0
      %1861 = vmatprep.subr.bf16.mxu0 0
      %1862 = vmatpush1.bf16.msra.mxu0 0
      %1863 = vmatprep.subr.bf16.mxu0 0
      %1864 = vmatpush1.bf16.msra.mxu0 0
      %1865 = vmatprep.subr.bf16.mxu0 0
      %1866 = vmatpush1.bf16.msra.mxu0 0
      %1867 = vmatprep.subr.bf16.mxu0 0
      %1868 = vmatpush1.bf16.msra.mxu0 0
      %1869 = vmatprep.subr.bf16.mxu0 0
      %1870 = vmatpush1.bf16.msra.mxu0 0
      %1871 = vmatprep.mubr.bf16.mxu0 0
      %1872 = vmatmul.mubr.bf16.gmra.mrb[0].mxu0 %v1787
      %v1873 = vpop.f32.mrb[0].mxu0
      %v1874 = vadd.f32 0.0, %v1873
      %v1875 = vpop.f32.mrb[0].mxu0
      %v1876 = vpop.f32.mrb[0].mxu0
      %v1877 = vpop.f32.mrb[0].mxu0
      %1878 = vdwg.mxu0
      %v1879 = vadd.f32 %v1773, %v1833
      %v1880 = vadd.f32 %v1774, %v1835
      %v1881 = vadd.f32 %v1775, %v1874
      %s1882 = scalar_lea.vmem %s4, 20
      %v1883 = vld [vmem:[%s1882] sm:$0xf]
      %1884 = vrot.lane.b32.xlu0 %v1360, 108
      %v1885 = vpop.permute.xlu0 %1884
      %1886 = vrot.lane.b32.xlu0 %v1368, 108
      %v1887 = vpop.permute.xlu0 %1886
      %1888 = vrot.lane.b32.xlu0 %v1367, 108
      %v1889 = vpop.permute.xlu0 %1888
      %v1890 = vsel %vm849, %v1885, %v1887
      %v1891 = vsel %vm849, %v1887, %v1889
      %v1893 = vsel %vm1377, %v1883, 0
      %v1896 = vsel %vm1307, %v1890, 0
      %v1899 = vsel %vm1307, %v1891, 0
      %v1902 = vsel %vm1307, %v1889, 0
      %1904 = vmatprep.subr.bf16.mxu0 %v1899
      %1905 = vmatpush1.bf16.msra.mxu0 %v1896
      %1906 = vmatprep.subr.bf16.mxu0 0
      %1907 = vmatpush1.bf16.msra.mxu0 0
      %1908 = vmatprep.subr.bf16.mxu0 0
      %1909 = vmatpush1.bf16.msra.mxu0 0
      %1910 = vmatprep.subr.bf16.mxu0 0
      %1911 = vmatpush1.bf16.msra.mxu0 0
      %1912 = vmatprep.subr.bf16.mxu0 0
      %1913 = vmatpush1.bf16.msra.mxu0 0
      %1914 = vmatprep.subr.bf16.mxu0 0
      %1915 = vmatpush1.bf16.msra.mxu0 0
      %1916 = vmatprep.subr.bf16.mxu0 0
      %1917 = vmatpush1.bf16.msra.mxu0 0
      %1918 = vmatprep.subr.bf16.mxu0 0
      %1919 = vmatpush1.bf16.msra.mxu0 0
      %1920 = vmatprep.subr.bf16.mxu0 0
      %1921 = vmatpush1.bf16.msra.mxu0 0
      %1922 = vmatprep.subr.bf16.mxu0 0
      %1923 = vmatpush1.bf16.msra.mxu0 0
      %1924 = vmatprep.subr.bf16.mxu0 0
      %1925 = vmatpush1.bf16.msra.mxu0 0
      %1926 = vmatprep.subr.bf16.mxu0 0
      %1927 = vmatpush1.bf16.msra.mxu0 0
      %1928 = vmatprep.subr.bf16.mxu0 0
      %1929 = vmatpush1.bf16.msra.mxu0 0
      %1930 = vmatprep.subr.bf16.mxu0 0
      %1931 = vmatpush1.bf16.msra.mxu0 0
      %1932 = vmatprep.subr.bf16.mxu0 0
      %1933 = vmatpush1.bf16.msra.mxu0 0
      %1934 = vmatprep.subr.bf16.mxu0 0
      %1935 = vmatpush1.bf16.msra.mxu0 0
      %1936 = vmatprep.mubr.bf16.mxu0 0
      %1937 = vmatmul.mubr.bf16.gmra.mrb[0].mxu0 %v1893
      %v1938 = vpop.f32.mrb[0].mxu0
      %v1939 = vadd.f32 0.0, %v1938
      %v1940 = vpop.f32.mrb[0].mxu0
      %v1941 = vadd.f32 0.0, %v1940
      %v1942 = vpop.f32.mrb[0].mxu0
      %v1943 = vpop.f32.mrb[0].mxu0
      %1944 = vdwg.mxu0
      %1945 = vmatprep.subr.bf16.mxu0 0
      %1946 = vmatpush1.bf16.msra.mxu0 %v1902
      %1947 = vmatprep.subr.bf16.mxu0 0
      %1948 = vmatpush1.bf16.msra.mxu0 0
      %1949 = vmatprep.subr.bf16.mxu0 0
      %1950 = vmatpush1.bf16.msra.mxu0 0
      %1951 = vmatprep.subr.bf16.mxu0 0
      %1952 = vmatpush1.bf16.msra.mxu0 0
      %1953 = vmatprep.subr.bf16.mxu0 0
      %1954 = vmatpush1.bf16.msra.mxu0 0
      %1955 = vmatprep.subr.bf16.mxu0 0
      %1956 = vmatpush1.bf16.msra.mxu0 0
      %1957 = vmatprep.subr.bf16.mxu0 0
      %1958 = vmatpush1.bf16.msra.mxu0 0
      %1959 = vmatprep.subr.bf16.mxu0 0
      %1960 = vmatpush1.bf16.msra.mxu0 0
      %1961 = vmatprep.subr.bf16.mxu0 0
      %1962 = vmatpush1.bf16.msra.mxu0 0
      %1963 = vmatprep.subr.bf16.mxu0 0
      %1964 = vmatpush1.bf16.msra.mxu0 0
      %1965 = vmatprep.subr.bf16.mxu0 0
      %1966 = vmatpush1.bf16.msra.mxu0 0
      %1967 = vmatprep.subr.bf16.mxu0 0
      %1968 = vmatpush1.bf16.msra.mxu0 0
      %1969 = vmatprep.subr.bf16.mxu0 0
      %1970 = vmatpush1.bf16.msra.mxu0 0
      %1971 = vmatprep.subr.bf16.mxu0 0
      %1972 = vmatpush1.bf16.msra.mxu0 0
      %1973 = vmatprep.subr.bf16.mxu0 0
      %1974 = vmatpush1.bf16.msra.mxu0 0
      %1975 = vmatprep.subr.bf16.mxu0 0
      %1976 = vmatpush1.bf16.msra.mxu0 0
      %1977 = vmatprep.mubr.bf16.mxu0 0
      %1978 = vmatmul.mubr.bf16.gmra.mrb[0].mxu0 %v1893
      %v1979 = vpop.f32.mrb[0].mxu0
      %v1980 = vadd.f32 0.0, %v1979
      %v1981 = vpop.f32.mrb[0].mxu0
      %v1982 = vpop.f32.mrb[0].mxu0
      %v1983 = vpop.f32.mrb[0].mxu0
      %1984 = vdwg.mxu0
      %v1985 = vadd.f32 %v1879, %v1939
      %v1986 = vadd.f32 %v1880, %v1941
      %v1987 = vadd.f32 %v1881, %v1980
      %s1988 = scalar_lea.vmem %s4, 24
      %v1989 = vld [vmem:[%s1988] sm:$0xf]
      %1990 = vrot.lane.b32.xlu0 %v1360, 92
      %v1991 = vpop.permute.xlu0 %1990
      %1992 = vrot.lane.b32.xlu0 %v1368, 92
      %v1993 = vpop.permute.xlu0 %1992
      %1994 = vrot.lane.b32.xlu0 %v1367, 92
      %v1995 = vpop.permute.xlu0 %1994
      %v1996 = vsel %vm956, %v1991, %v1993
      %v1997 = vsel %vm956, %v1993, %v1995
      %v1999 = vsel %vm1377, %v1989, 0
      %v2002 = vsel %vm1307, %v1996, 0
      %v2005 = vsel %vm1307, %v1997, 0
      %v2008 = vsel %vm1307, %v1995, 0
      %2010 = vmatprep.subr.bf16.mxu0 %v2005
      %2011 = vmatpush1.bf16.msra.mxu0 %v2002
      %2012 = vmatprep.subr.bf16.mxu0 0
      %2013 = vmatpush1.bf16.msra.mxu0 0
      %2014 = vmatprep.subr.bf16.mxu0 0
      %2015 = vmatpush1.bf16.msra.mxu0 0
      %2016 = vmatprep.subr.bf16.mxu0 0
      %2017 = vmatpush1.bf16.msra.mxu0 0
      %2018 = vmatprep.subr.bf16.mxu0 0
      %2019 = vmatpush1.bf16.msra.mxu0 0
      %2020 = vmatprep.subr.bf16.mxu0 0
      %2021 = vmatpush1.bf16.msra.mxu0 0
      %2022 = vmatprep.subr.bf16.mxu0 0
      %2023 = vmatpush1.bf16.msra.mxu0 0
      %2024 = vmatprep.subr.bf16.mxu0 0
      %2025 = vmatpush1.bf16.msra.mxu0 0
      %2026 = vmatprep.subr.bf16.mxu0 0
      %2027 = vmatpush1.bf16.msra.mxu0 0
      %2028 = vmatprep.subr.bf16.mxu0 0
      %2029 = vmatpush1.bf16.msra.mxu0 0
      %2030 = vmatprep.subr.bf16.mxu0 0
      %2031 = vmatpush1.bf16.msra.mxu0 0
      %2032 = vmatprep.subr.bf16.mxu0 0
      %2033 = vmatpush1.bf16.msra.mxu0 0
      %2034 = vmatprep.subr.bf16.mxu0 0
      %2035 = vmatpush1.bf16.msra.mxu0 0
      %2036 = vmatprep.subr.bf16.mxu0 0
      %2037 = vmatpush1.bf16.msra.mxu0 0
      %2038 = vmatprep.subr.bf16.mxu0 0
      %2039 = vmatpush1.bf16.msra.mxu0 0
      %2040 = vmatprep.subr.bf16.mxu0 0
      %2041 = vmatpush1.bf16.msra.mxu0 0
      %2042 = vmatprep.mubr.bf16.mxu0 0
      %2043 = vmatmul.mubr.bf16.gmra.mrb[0].mxu0 %v1999
      %v2044 = vpop.f32.mrb[0].mxu0
      %v2045 = vadd.f32 0.0, %v2044
      %v2046 = vpop.f32.mrb[0].mxu0
      %v2047 = vadd.f32 0.0, %v2046
      %v2048 = vpop.f32.mrb[0].mxu0
      %v2049 = vpop.f32.mrb[0].mxu0
      %2050 = vdwg.mxu0
      %2051 = vmatprep.subr.bf16.mxu0 0
      %2052 = vmatpush1.bf16.msra.mxu0 %v2008
      %2053 = vmatprep.subr.bf16.mxu0 0
      %2054 = vmatpush1.bf16.msra.mxu0 0
      %2055 = vmatprep.subr.bf16.mxu0 0
      %2056 = vmatpush1.bf16.msra.mxu0 0
      %2057 = vmatprep.subr.bf16.mxu0 0
      %2058 = vmatpush1.bf16.msra.mxu0 0
      %2059 = vmatprep.subr.bf16.mxu0 0
      %2060 = vmatpush1.bf16.msra.mxu0 0
      %2061 = vmatprep.subr.bf16.mxu0 0
      %2062 = vmatpush1.bf16.msra.mxu0 0
      %2063 = vmatprep.subr.bf16.mxu0 0
      %2064 = vmatpush1.bf16.msra.mxu0 0
      %2065 = vmatprep.subr.bf16.mxu0 0
      %2066 = vmatpush1.bf16.msra.mxu0 0
      %2067 = vmatprep.subr.bf16.mxu0 0
      %2068 = vmatpush1.bf16.msra.mxu0 0
      %2069 = vmatprep.subr.bf16.mxu0 0
      %2070 = vmatpush1.bf16.msra.mxu0 0
      %2071 = vmatprep.subr.bf16.mxu0 0
      %2072 = vmatpush1.bf16.msra.mxu0 0
      %2073 = vmatprep.subr.bf16.mxu0 0
      %2074 = vmatpush1.bf16.msra.mxu0 0
      %2075 = vmatprep.subr.bf16.mxu0 0
      %2076 = vmatpush1.bf16.msra.mxu0 0
      %2077 = vmatprep.subr.bf16.mxu0 0
      %2078 = vmatpush1.bf16.msra.mxu0 0
      %2079 = vmatprep.subr.bf16.mxu0 0
      %2080 = vmatpush1.bf16.msra.mxu0 0
      %2081 = vmatprep.subr.bf16.mxu0 0
      %2082 = vmatpush1.bf16.msra.mxu0 0
      %2083 = vmatprep.mubr.bf16.mxu0 0
      %2084 = vmatmul.mubr.bf16.gmra.mrb[0].mxu0 %v1999
      %v2085 = vpop.f32.mrb[0].mxu0
      %v2086 = vadd.f32 0.0, %v2085
      %v2087 = vpop.f32.mrb[0].mxu0
      %v2088 = vpop.f32.mrb[0].mxu0
      %v2089 = vpop.f32.mrb[0].mxu0
      %2090 = vdwg.mxu0
      %v2091 = vadd.f32 %v1985, %v2045
      %v2092 = vadd.f32 %v1986, %v2047
      %v2093 = vadd.f32 %v1987, %v2086
      %s2094 = scalar_lea.vmem %s4, 28
      %v2095 = vld [vmem:[%s2094] sm:$0xf]
      %2096 = vrot.lane.b32.xlu0 %v1360, 91
      %v2097 = vpop.permute.xlu0 %2096
      %2098 = vrot.lane.b32.xlu0 %v1368, 91
      %v2099 = vpop.permute.xlu0 %2098
      %2100 = vrot.lane.b32.xlu0 %v1367, 91
      %v2101 = vpop.permute.xlu0 %2100
      %v2102 = vsel %vm1063, %v2097, %v2099
      %v2103 = vsel %vm1063, %v2099, %v2101
      %v2105 = vsel %vm1377, %v2095, 0
      %v2108 = vsel %vm1307, %v2102, 0
      %v2111 = vsel %vm1307, %v2103, 0
      %v2114 = vsel %vm1307, %v2101, 0
      %2116 = vmatprep.subr.bf16.mxu0 %v2111
      %2117 = vmatpush1.bf16.msra.mxu0 %v2108
      %2118 = vmatprep.subr.bf16.mxu0 0
      %2119 = vmatpush1.bf16.msra.mxu0 0
      %2120 = vmatprep.subr.bf16.mxu0 0
      %2121 = vmatpush1.bf16.msra.mxu0 0
      %2122 = vmatprep.subr.bf16.mxu0 0
      %2123 = vmatpush1.bf16.msra.mxu0 0
      %2124 = vmatprep.subr.bf16.mxu0 0
      %2125 = vmatpush1.bf16.msra.mxu0 0
      %2126 = vmatprep.subr.bf16.mxu0 0
      %2127 = vmatpush1.bf16.msra.mxu0 0
      %2128 = vmatprep.subr.bf16.mxu0 0
      %2129 = vmatpush1.bf16.msra.mxu0 0
      %2130 = vmatprep.subr.bf16.mxu0 0
      %2131 = vmatpush1.bf16.msra.mxu0 0
      %2132 = vmatprep.subr.bf16.mxu0 0
      %2133 = vmatpush1.bf16.msra.mxu0 0
      %2134 = vmatprep.subr.bf16.mxu0 0
      %2135 = vmatpush1.bf16.msra.mxu0 0
      %2136 = vmatprep.subr.bf16.mxu0 0
      %2137 = vmatpush1.bf16.msra.mxu0 0
      %2138 = vmatprep.subr.bf16.mxu0 0
      %2139 = vmatpush1.bf16.msra.mxu0 0
      %2140 = vmatprep.subr.bf16.mxu0 0
      %2141 = vmatpush1.bf16.msra.mxu0 0
      %2142 = vmatprep.subr.bf16.mxu0 0
      %2143 = vmatpush1.bf16.msra.mxu0 0
      %2144 = vmatprep.subr.bf16.mxu0 0
      %2145 = vmatpush1.bf16.msra.mxu0 0
      %2146 = vmatprep.subr.bf16.mxu0 0
      %2147 = vmatpush1.bf16.msra.mxu0 0
      %2148 = vmatprep.mubr.bf16.mxu0 0
      %2149 = vmatmul.mubr.bf16.gmra.mrb[0].mxu0 %v2105
      %v2150 = vpop.f32.mrb[0].mxu0
      %v2151 = vadd.f32 0.0, %v2150
      %v2152 = vpop.f32.mrb[0].mxu0
      %v2153 = vadd.f32 0.0, %v2152
      %v2154 = vpop.f32.mrb[0].mxu0
      %v2155 = vpop.f32.mrb[0].mxu0
      %2156 = vdwg.mxu0
      %2157 = vmatprep.subr.bf16.mxu0 0
      %2158 = vmatpush1.bf16.msra.mxu0 %v2114
      %2159 = vmatprep.subr.bf16.mxu0 0
      %2160 = vmatpush1.bf16.msra.mxu0 0
      %2161 = vmatprep.subr.bf16.mxu0 0
      %2162 = vmatpush1.bf16.msra.mxu0 0
      %2163 = vmatprep.subr.bf16.mxu0 0
      %2164 = vmatpush1.bf16.msra.mxu0 0
      %2165 = vmatprep.subr.bf16.mxu0 0
      %2166 = vmatpush1.bf16.msra.mxu0 0
      %2167 = vmatprep.subr.bf16.mxu0 0
      %2168 = vmatpush1.bf16.msra.mxu0 0
      %2169 = vmatprep.subr.bf16.mxu0 0
      %2170 = vmatpush1.bf16.msra.mxu0 0
      %2171 = vmatprep.subr.bf16.mxu0 0
      %2172 = vmatpush1.bf16.msra.mxu0 0
      %2173 = vmatprep.subr.bf16.mxu0 0
      %2174 = vmatpush1.bf16.msra.mxu0 0
      %2175 = vmatprep.subr.bf16.mxu0 0
      %2176 = vmatpush1.bf16.msra.mxu0 0
      %2177 = vmatprep.subr.bf16.mxu0 0
      %2178 = vmatpush1.bf16.msra.mxu0 0
      %2179 = vmatprep.subr.bf16.mxu0 0
      %2180 = vmatpush1.bf16.msra.mxu0 0
      %2181 = vmatprep.subr.bf16.mxu0 0
      %2182 = vmatpush1.bf16.msra.mxu0 0
      %2183 = vmatprep.subr.bf16.mxu0 0
      %2184 = vmatpush1.bf16.msra.mxu0 0
      %2185 = vmatprep.subr.bf16.mxu0 0
      %2186 = vmatpush1.bf16.msra.mxu0 0
      %2187 = vmatprep.subr.bf16.mxu0 0
      %2188 = vmatpush1.bf16.msra.mxu0 0
      %2189 = vmatprep.mubr.bf16.mxu0 0
      %2190 = vmatmul.mubr.bf16.gmra.mrb[0].mxu0 %v2105
      %v2191 = vpop.f32.mrb[0].mxu0
      %v2192 = vadd.f32 0.0, %v2191
      %v2193 = vpop.f32.mrb[0].mxu0
      %v2194 = vpop.f32.mrb[0].mxu0
      %v2195 = vpop.f32.mrb[0].mxu0
      %2196 = vdwg.mxu0
      %v2197 = vadd.f32 %v2091, %v2151
      %v2198 = vadd.f32 %v2092, %v2153
      %v2199 = vadd.f32 %v2093, %v2192
      %s2200 = scalar_lea.vmem %s4, 32
      %v2201 = vld [vmem:[%s2200] sm:$0xf]
      %2202 = vrot.lane.b32.xlu0 %v1360, 90
      %v2203 = vpop.permute.xlu0 %2202
      %2204 = vrot.lane.b32.xlu0 %v1368, 90
      %v2205 = vpop.permute.xlu0 %2204
      %2206 = vrot.lane.b32.xlu0 %v1367, 90
      %v2207 = vpop.permute.xlu0 %2206
      %v2208 = vsel %vm1170, %v2203, %v2205
      %v2209 = vsel %vm1170, %v2205, %v2207
      %v2211 = vsel %vm1377, %v2201, 0
      %v2214 = vsel %vm1307, %v2208, 0
      %v2217 = vsel %vm1307, %v2209, 0
      %v2220 = vsel %vm1307, %v2207, 0
      %2222 = vmatprep.subr.bf16.mxu0 %v2217
      %2223 = vmatpush1.bf16.msra.mxu0 %v2214
      %2224 = vmatprep.subr.bf16.mxu0 0
      %2225 = vmatpush1.bf16.msra.mxu0 0
      %2226 = vmatprep.subr.bf16.mxu0 0
      %2227 = vmatpush1.bf16.msra.mxu0 0
      %2228 = vmatprep.subr.bf16.mxu0 0
      %2229 = vmatpush1.bf16.msra.mxu0 0
      %2230 = vmatprep.subr.bf16.mxu0 0
      %2231 = vmatpush1.bf16.msra.mxu0 0
      %2232 = vmatprep.subr.bf16.mxu0 0
      %2233 = vmatpush1.bf16.msra.mxu0 0
      %2234 = vmatprep.subr.bf16.mxu0 0
      %2235 = vmatpush1.bf16.msra.mxu0 0
      %2236 = vmatprep.subr.bf16.mxu0 0
      %2237 = vmatpush1.bf16.msra.mxu0 0
      %2238 = vmatprep.subr.bf16.mxu0 0
      %2239 = vmatpush1.bf16.msra.mxu0 0
      %2240 = vmatprep.subr.bf16.mxu0 0
      %2241 = vmatpush1.bf16.msra.mxu0 0
      %2242 = vmatprep.subr.bf16.mxu0 0
      %2243 = vmatpush1.bf16.msra.mxu0 0
      %2244 = vmatprep.subr.bf16.mxu0 0
      %2245 = vmatpush1.bf16.msra.mxu0 0
      %2246 = vmatprep.subr.bf16.mxu0 0
      %2247 = vmatpush1.bf16.msra.mxu0 0
      %2248 = vmatprep.subr.bf16.mxu0 0
      %2249 = vmatpush1.bf16.msra.mxu0 0
      %2250 = vmatprep.subr.bf16.mxu0 0
      %2251 = vmatpush1.bf16.msra.mxu0 0
      %2252 = vmatprep.subr.bf16.mxu0 0
      %2253 = vmatpush1.bf16.msra.mxu0 0
      %2254 = vmatprep.mubr.bf16.mxu0 0
      %2255 = vmatmul.mubr.bf16.gmra.mrb[0].mxu0 %v2211
      %v2256 = vpop.f32.mrb[0].mxu0
      %v2257 = vadd.f32 0.0, %v2256
      %v2258 = vpop.f32.mrb[0].mxu0
      %v2259 = vadd.f32 0.0, %v2258
      %v2260 = vpop.f32.mrb[0].mxu0
      %v2261 = vpop.f32.mrb[0].mxu0
      %2262 = vdwg.mxu0
      %2263 = vmatprep.subr.bf16.mxu0 0
      %2264 = vmatpush1.bf16.msra.mxu0 %v2220
      %2265 = vmatprep.subr.bf16.mxu0 0
      %2266 = vmatpush1.bf16.msra.mxu0 0
      %2267 = vmatprep.subr.bf16.mxu0 0
      %2268 = vmatpush1.bf16.msra.mxu0 0
      %2269 = vmatprep.subr.bf16.mxu0 0
      %2270 = vmatpush1.bf16.msra.mxu0 0
      %2271 = vmatprep.subr.bf16.mxu0 0
      %2272 = vmatpush1.bf16.msra.mxu0 0
      %2273 = vmatprep.subr.bf16.mxu0 0
      %2274 = vmatpush1.bf16.msra.mxu0 0
      %2275 = vmatprep.subr.bf16.mxu0 0
      %2276 = vmatpush1.bf16.msra.mxu0 0
      %2277 = vmatprep.subr.bf16.mxu0 0
      %2278 = vmatpush1.bf16.msra.mxu0 0
      %2279 = vmatprep.subr.bf16.mxu0 0
      %2280 = vmatpush1.bf16.msra.mxu0 0
      %2281 = vmatprep.subr.bf16.mxu0 0
      %2282 = vmatpush1.bf16.msra.mxu0 0
      %2283 = vmatprep.subr.bf16.mxu0 0
      %2284 = vmatpush1.bf16.msra.mxu0 0
      %2285 = vmatprep.subr.bf16.mxu0 0
      %2286 = vmatpush1.bf16.msra.mxu0 0
      %2287 = vmatprep.subr.bf16.mxu0 0
      %2288 = vmatpush1.bf16.msra.mxu0 0
      %2289 = vmatprep.subr.bf16.mxu0 0
      %2290 = vmatpush1.bf16.msra.mxu0 0
      %2291 = vmatprep.subr.bf16.mxu0 0
      %2292 = vmatpush1.bf16.msra.mxu0 0
      %2293 = vmatprep.subr.bf16.mxu0 0
      %2294 = vmatpush1.bf16.msra.mxu0 0
      %2295 = vmatprep.mubr.bf16.mxu0 0
      %2296 = vmatmul.mubr.bf16.gmra.mrb[0].mxu0 %v2211
      %v2297 = vpop.f32.mrb[0].mxu0
      %v2298 = vadd.f32 0.0, %v2297
      %v2299 = vpop.f32.mrb[0].mxu0
      %v2300 = vpop.f32.mrb[0].mxu0
      %v2301 = vpop.f32.mrb[0].mxu0
      %2302 = vdwg.mxu0
      %v2303 = vadd.f32 %v2197, %v2257
      %v2304 = vadd.f32 %v2198, %v2259
      %v2305 = vadd.f32 %v2199, %v2298
      %2307 = vset.pattern.permute.xlu0 0
      %2308 = vperm.xlu0 %2307, %v1347
      %v2309 = vpop.permute.xlu0 %2308
      %v2311 = vmul.f32 %v2303, %v2309
      %v2312 = vmul.f32 %v2304, %v2309
      %v2313 = vmul.f32 %v2305, %v2309
      %2315 = vset.pattern.permute.xlu0 0
      %2316 = vperm.xlu0 %2315, %v1348
      %v2317 = vpop.permute.xlu0 %2316
      %v2319 = vadd.f32 %v2311, %v2317
      %v2320 = vadd.f32 %v2312, %v2317
      %v2321 = vadd.f32 %v2313, %v2317
      %v2322 = vmax.f32 %v2319, 0.0
      %v2323 = vmax.f32 %v2320, 0.0
      %v2324 = vmax.f32 %v2321, 0.0
      %2325 = vst [vmem:[%s305] sm:$0xff] %v2322
      %2326 = vst [vmem:[%s305 + $0x8] sm:$0xff] %v2323
      %vm2327 = vcmask 261120
      %2328 = vst.msk [vmem:[%s305 + $0x10] sm:$0xff] %vm2327, %v2324
      %p2329 = scmp.lt.s32.totalorder %s19, 1
      %s2330 = scalar_select %p2329, %s19, 1
      %s2331 = smul.addr %s2330, 3
      %s2332 = smul.addr %s2331, 8
      %s2333 = scalar_lea.vmem %s8, %s2332
      // Predicated region
      $region53: #{up_forward.1} parent=51 // pred_check
        %p2334 = pneg %p210
      $region54: #{up_forward.1} parent=51 // pred_check_branch
        %2336 = sbr.rel (%p2334) target = $region56
      $region55: #{up_forward.1} parent=51 // pred_region
        _
      $region56: #{up_forward.1} parent=51 // pred_fallthru
        _
    $region52: #{up_forward.1} parent=5 // pred_fallthru
      _
    %p2337 = scmp.le.s32.totalorder 2, %s14
    // Predicated region
    $region57: #{up_forward.1} parent=5 // pred_check
      %p2338 = pneg %p2337
    $region58: #{up_forward.1} parent=5 // pred_check_branch
      %2340 = sbr.rel (%p2338) target = $region60
    $region59: #{up_forward.1} parent=5 // pred_region
      %s2341 = ssub.s32 %s14, 2
      // Predicated region
      $region61: #{up_forward.1} parent=59 // pred_check
        %p2342 = pneg %p216
      $region62: #{up_forward.1} parent=59 // pred_check_branch
        %2344 = sbr.rel (%p2342) target = $region64
      $region63: #{up_forward.1} parent=59 // pred_region
        %p2345 = scmp.lt.s32.totalorder %s20, 1
        %s2346 = scalar_select %p2345, %s20, 1
        %s2347 = smul.addr %s2346, 3
        %s2348 = smul.addr %s2347, 8
        %s2349 = scalar_lea.vmem %s8, %s2348
      $region64: #{up_forward.1} parent=59 // pred_fallthru
        _
    $region60: #{up_forward.1} parent=5 // pred_fallthru
      _
  $region6: #{up_forward.1} parent=0 // loop_footer
    %s18 = sadd.s32 1, %s14
  $region7: #{up_forward.1} parent=0 // loop_footer_branch
    %13 = sbr.rel target = $region3
  $region8: #{up_forward.1} parent=0 // loop_exit
    _

</llo_original>
